<compile_context>
chip_gen: v7x
topology: tpu7x:2x2x1
jax: 0.10.0
libtpu: 0.0.40
codegen_flags: <defaults>
</compile_context>

<pallas_src>
import jax
import jax.numpy as jnp
from jax.experimental import pallas as pl
from jax.experimental.pallas import tpu as pltpu


def _round_up(x, m):
    return ((x + m - 1) // m) * m


def _pointnetpp_kernel(x_ref,
                       w1_ref, b1_ref,
                       w2_ref, b2_ref,
                       w3_ref, b3_ref,
                       w4_ref, b4_ref,
                       w5_ref, b5_ref,
                       o_ref):
    """Fused per-point MLP chain (5 x 1x1 conv == 5 channel matmuls + ReLUs).

    All tensors keep points on the lane axis: x is (d, TN), layer l produces
    (C_l, TN).  Every dot accumulates in f32 on the MXU; activations are cast
    back to the weight dtype (bf16 on the fast path) between layers.  The
    bias+ReLU+cast epilogue is VPU filler under the MXU slot -- intentionally
    left as-is."""
    cdt = w1_ref.dtype                                         # compute dtype
    x = x_ref[...].astype(cdt)                                 # (d, TN)
    h = jnp.dot(w1_ref[...], x, preferred_element_type=jnp.float32) + b1_ref[...]
    h = jnp.maximum(h, 0.0).astype(cdt)                        # (64, TN)
    h = jnp.dot(w2_ref[...], h, preferred_element_type=jnp.float32) + b2_ref[...]
    h = jnp.maximum(h, 0.0).astype(cdt)                        # (128, TN)
    h = jnp.dot(w3_ref[...], h, preferred_element_type=jnp.float32) + b3_ref[...]
    h = jnp.maximum(h, 0.0).astype(cdt)                        # (256, TN)
    h = jnp.dot(w4_ref[...], h, preferred_element_type=jnp.float32) + b4_ref[...]
    h = jnp.maximum(h, 0.0).astype(cdt)                        # (512, TN)
    out = jnp.dot(w5_ref[...], h, preferred_element_type=jnp.float32) + b5_ref[...]
    o_ref[...] = out.astype(o_ref.dtype)                       # (d, TN)


def pointnetplusplus_forward(x, params, *, tile_n=1024,
                             compute_dtype=jnp.bfloat16,
                             out_dtype=jnp.float32):
    """x: (B, d, N) array (NCW, like the PyTorch module).
    params: w{i} of shape (Cout, Cin) -- the PyTorch Conv1d weight with the
    trailing kernel dim squeezed -- and b{i} of shape (Cout, 1), all f32.
    Returns (B, d, N) in out_dtype."""
    x = x.astype(jnp.float32)          # matches PyTorch x.float(); no-op for f32
    B, d, N = x.shape

    # Lane-aligned point tile; never over-allocate, never leave a dual-TC chip
    # with a single grid step when the problem is big enough to split.
    tile_n = max(128, min(int(tile_n), _round_up(N, 128)))
    tile_n = _round_up(tile_n, 128)
    n_tiles = pl.cdiv(N, tile_n)
    if B * n_tiles < 2 and N > 128:
        tile_n = _round_up(-(-N // 2), 128)
        n_tiles = pl.cdiv(N, tile_n)

    # Weights cast once to the compute dtype; biases stay f32 (added to the
    # f32 MXU accumulators).
    w1, w2, w3, w4, w5 = (params[f"w{i}"].astype(compute_dtype) for i in range(1, 6))
    b1, b2, b3, b4, b5 = (params[f"b{i}"].astype(jnp.float32) for i in range(1, 6))

    full = lambda shape: pl.BlockSpec(shape, lambda b, n: (0, 0))   # resident

    return pl.pallas_call(
        _pointnetpp_kernel,
        out_shape=jax.ShapeDtypeStruct((B, d, N), out_dtype),
        grid_spec=pltpu.PrefetchScalarGridSpec(
            num_scalar_prefetch=0,
            grid=(B, n_tiles),
            in_specs=[
                # batch dim squeezed; kernel sees a (d, tile_n) slab.
                pl.BlockSpec((None, d, tile_n), lambda b, n: (b, 0, n)),
                full(w1.shape), full(b1.shape),
                full(w2.shape), full(b2.shape),
                full(w3.shape), full(b3.shape),
                full(w4.shape), full(b4.shape),
                full(w5.shape), full(b5.shape),
            ],
            out_specs=pl.BlockSpec((None, d, tile_n), lambda b, n: (b, 0, n)),
        ),
        compiler_params=pltpu.CompilerParams(
            dimension_semantics=("parallel", "parallel")),
    )(x, w1, b1, w2, b2, w3, b3, w4, b4, w5, b5)


def init_params(d, key):
    """Deterministic synthetic weights in the PyTorch Conv1d layout:
    weight (Cout, Cin) (kernel dim of 1 squeezed), bias (Cout, 1)."""
    dims = [(d, 64), (64, 128), (128, 256), (256, 512), (512, d)]
    params = {}
    for idx, (cin, cout) in enumerate(dims, start=1):
        key, kw, kb = jax.random.split(key, 3)
        scale = 1.0 / jnp.sqrt(jnp.float32(cin))
        params[f"w{idx}"] = jax.random.normal(kw, (cout, cin), jnp.float32) * scale
        params[f"b{idx}"] = jax.random.normal(kb, (cout, 1), jnp.float32) * scale
    return params


def reference_forward(x, params):
    """Pure-JAX f32 reference of the PyTorch forward (NCW conv1d k=1 chain)."""
    h = x.astype(jnp.float32)                                   # (B, d, N)
    for i in range(1, 5):
        h = jnp.einsum("oi,bin->bon", params[f"w{i}"], h) + params[f"b{i}"][None]
        h = jnp.maximum(h, 0.0)
    h = jnp.einsum("oi,bin->bon", params["w5"], h) + params["b5"][None]
    return h                                                    # (B, d, N)


if __name__ == "__main__":
    key = jax.random.PRNGKey(0)
    B, d, N = 2, 4, 16                                          # small NCW, like PyTorch
    k_x, k_p = jax.random.split(key)
    x = jax.random.normal(k_x, (B, d, N), jnp.float32)
    params = init_params(d, k_p)

    ref = reference_forward(x, params)

    # f32 path: tight correctness check against the pure-JAX reference.
    out_f32 = jax.block_until_ready(
        pointnetplusplus_forward(x, params, compute_dtype=jnp.float32))
    assert out_f32.shape == (B, d, N)
    assert jnp.allclose(out_f32, ref, atol=1e-4, rtol=1e-4), "f32 mismatch vs reference"

    # bf16 fast path (default): f32 accumulation, loose tolerance for bf16 weights.
    out_bf16 = jax.block_until_ready(pointnetplusplus_forward(x, params))
    assert out_bf16.shape == (B, d, N)
    assert jnp.allclose(out_bf16, ref, atol=1e-1, rtol=1e-1), "bf16 mismatch vs reference"

    print("KERNEL_OK")
</pallas_src>

<mosaic_0001>
module attributes {stable_mosaic.version = 11 : i64} {
  func.func @_pointnetpp_kernel(%arg0: i32, %arg1: i32, %arg2: memref<1x4x128xf32, #tpu.memory_space<vmem>>, %arg3: memref<64x4xf32, #tpu.memory_space<vmem>>, %arg4: memref<64x1xf32, #tpu.memory_space<vmem>>, %arg5: memref<128x64xf32, #tpu.memory_space<vmem>>, %arg6: memref<128x1xf32, #tpu.memory_space<vmem>>, %arg7: memref<256x128xf32, #tpu.memory_space<vmem>>, %arg8: memref<256x1xf32, #tpu.memory_space<vmem>>, %arg9: memref<512x256xf32, #tpu.memory_space<vmem>>, %arg10: memref<512x1xf32, #tpu.memory_space<vmem>>, %arg11: memref<4x512xf32, #tpu.memory_space<vmem>>, %arg12: memref<4x1xf32, #tpu.memory_space<vmem>>, %arg13: memref<1x4x128xf32, #tpu.memory_space<vmem>>) attributes {dimension_semantics = [#tpu.dimension_semantics<parallel>, #tpu.dimension_semantics<parallel>], iteration_bounds = array<i64: 2, 1>, scalar_prefetch = 0 : i64, scratch_operands = 0 : i64, tpu.core_type = #tpu.core_type<tc>, window_params = [{transform_indices = @transform_0, window_bounds = array<i64: 1, 4, 128>}, {pipeline_mode = #tpu.pipeline_mode<synchronous>, transform_indices = @transform_1, window_bounds = array<i64: 64, 4>}, {pipeline_mode = #tpu.pipeline_mode<synchronous>, transform_indices = @transform_2, window_bounds = array<i64: 64, 1>}, {pipeline_mode = #tpu.pipeline_mode<synchronous>, transform_indices = @transform_3, window_bounds = array<i64: 128, 64>}, {pipeline_mode = #tpu.pipeline_mode<synchronous>, transform_indices = @transform_4, window_bounds = array<i64: 128, 1>}, {pipeline_mode = #tpu.pipeline_mode<synchronous>, transform_indices = @transform_5, window_bounds = array<i64: 256, 128>}, {pipeline_mode = #tpu.pipeline_mode<synchronous>, transform_indices = @transform_6, window_bounds = array<i64: 256, 1>}, {pipeline_mode = #tpu.pipeline_mode<synchronous>, transform_indices = @transform_7, window_bounds = array<i64: 512, 256>}, {pipeline_mode = #tpu.pipeline_mode<synchronous>, transform_indices = @transform_8, window_bounds = array<i64: 512, 1>}, {pipeline_mode = #tpu.pipeline_mode<synchronous>, transform_indices = @transform_9, window_bounds = array<i64: 4, 512>}, {pipeline_mode = #tpu.pipeline_mode<synchronous>, transform_indices = @transform_10, window_bounds = array<i64: 4, 1>}, {transform_indices = @transform_11, window_bounds = array<i64: 1, 4, 128>}]} {
    %c0 = arith.constant 0 : index
    %c0_0 = arith.constant 0 : index
    %c0_1 = arith.constant 0 : index
    %0 = vector.load %arg2[%c0, %c0_0, %c0_1] : memref<1x4x128xf32, #tpu.memory_space<vmem>>, vector<1x4x128xf32>
    %1 = vector.shape_cast %0 : vector<1x4x128xf32> to vector<4x128xf32>
    %c0_2 = arith.constant 0 : index
    %c0_3 = arith.constant 0 : index
    %2 = vector.load %arg3[%c0_2, %c0_3] : memref<64x4xf32, #tpu.memory_space<vmem>>, vector<64x4xf32>
    %cst = arith.constant dense<0.000000e+00> : vector<64x128xf32>
    %3 = tpu.matmul %2, %1, %cst {dimension_numbers = #tpu.dot_dimension_numbers<[1], [0], [0], [1], [0, 0, 1, 1], [], []>} : vector<64x4xf32>, vector<4x128xf32>, vector<64x128xf32> -> vector<64x128xf32>
    %c0_4 = arith.constant 0 : index
    %c0_5 = arith.constant 0 : index
    %4 = vector.load %arg4[%c0_4, %c0_5] : memref<64x1xf32, #tpu.memory_space<vmem>>, vector<64x1xf32>
    %5 = vector.broadcast %4 : vector<64x1xf32> to vector<64x128xf32>
    %6 = arith.addf %3, %5 : vector<64x128xf32>
    %cst_6 = arith.constant 0.000000e+00 : f32
    %7 = vector.broadcast %cst_6 : f32 to vector<64x128xf32>
    %8 = arith.maximumf %6, %7 : vector<64x128xf32>
    %c0_7 = arith.constant 0 : index
    %c0_8 = arith.constant 0 : index
    %9 = vector.load %arg5[%c0_7, %c0_8] : memref<128x64xf32, #tpu.memory_space<vmem>>, vector<128x64xf32>
    %cst_9 = arith.constant dense<0.000000e+00> : vector<128x128xf32>
    %10 = tpu.matmul %9, %8, %cst_9 {dimension_numbers = #tpu.dot_dimension_numbers<[1], [0], [0], [1], [0, 0, 1, 1], [], []>} : vector<128x64xf32>, vector<64x128xf32>, vector<128x128xf32> -> vector<128x128xf32>
    %c0_10 = arith.constant 0 : index
    %c0_11 = arith.constant 0 : index
    %11 = vector.load %arg6[%c0_10, %c0_11] : memref<128x1xf32, #tpu.memory_space<vmem>>, vector<128x1xf32>
    %12 = vector.broadcast %11 : vector<128x1xf32> to vector<128x128xf32>
    %13 = arith.addf %10, %12 : vector<128x128xf32>
    %cst_12 = arith.constant 0.000000e+00 : f32
    %14 = vector.broadcast %cst_12 : f32 to vector<128x128xf32>
    %15 = arith.maximumf %13, %14 : vector<128x128xf32>
    %c0_13 = arith.constant 0 : index
    %c0_14 = arith.constant 0 : index
    %16 = vector.load %arg7[%c0_13, %c0_14] : memref<256x128xf32, #tpu.memory_space<vmem>>, vector<256x128xf32>
    %cst_15 = arith.constant dense<0.000000e+00> : vector<256x128xf32>
    %17 = tpu.matmul %16, %15, %cst_15 {dimension_numbers = #tpu.dot_dimension_numbers<[1], [0], [0], [1], [0, 0, 1, 1], [], []>} : vector<256x128xf32>, vector<128x128xf32>, vector<256x128xf32> -> vector<256x128xf32>
    %c0_16 = arith.constant 0 : index
    %c0_17 = arith.constant 0 : index
    %18 = vector.load %arg8[%c0_16, %c0_17] : memref<256x1xf32, #tpu.memory_space<vmem>>, vector<256x1xf32>
    %19 = vector.broadcast %18 : vector<256x1xf32> to vector<256x128xf32>
    %20 = arith.addf %17, %19 : vector<256x128xf32>
    %cst_18 = arith.constant 0.000000e+00 : f32
    %21 = vector.broadcast %cst_18 : f32 to vector<256x128xf32>
    %22 = arith.maximumf %20, %21 : vector<256x128xf32>
    %c0_19 = arith.constant 0 : index
    %c0_20 = arith.constant 0 : index
    %23 = vector.load %arg9[%c0_19, %c0_20] : memref<512x256xf32, #tpu.memory_space<vmem>>, vector<512x256xf32>
    %cst_21 = arith.constant dense<0.000000e+00> : vector<512x128xf32>
    %24 = tpu.matmul %23, %22, %cst_21 {dimension_numbers = #tpu.dot_dimension_numbers<[1], [0], [0], [1], [0, 0, 1, 1], [], []>} : vector<512x256xf32>, vector<256x128xf32>, vector<512x128xf32> -> vector<512x128xf32>
    %c0_22 = arith.constant 0 : index
    %c0_23 = arith.constant 0 : index
    %25 = vector.load %arg10[%c0_22, %c0_23] : memref<512x1xf32, #tpu.memory_space<vmem>>, vector<512x1xf32>
    %26 = vector.broadcast %25 : vector<512x1xf32> to vector<512x128xf32>
    %27 = arith.addf %24, %26 : vector<512x128xf32>
    %cst_24 = arith.constant 0.000000e+00 : f32
    %28 = vector.broadcast %cst_24 : f32 to vector<512x128xf32>
    %29 = arith.maximumf %27, %28 : vector<512x128xf32>
    %c0_25 = arith.constant 0 : index
    %c0_26 = arith.constant 0 : index
    %30 = vector.load %arg11[%c0_25, %c0_26] : memref<4x512xf32, #tpu.memory_space<vmem>>, vector<4x512xf32>
    %cst_27 = arith.constant dense<0.000000e+00> : vector<4x128xf32>
    %31 = tpu.matmul %30, %29, %cst_27 {dimension_numbers = #tpu.dot_dimension_numbers<[1], [0], [0], [1], [0, 0, 1, 1], [], []>} : vector<4x512xf32>, vector<512x128xf32>, vector<4x128xf32> -> vector<4x128xf32>
    %c0_28 = arith.constant 0 : index
    %c0_29 = arith.constant 0 : index
    %32 = vector.load %arg12[%c0_28, %c0_29] : memref<4x1xf32, #tpu.memory_space<vmem>>, vector<4x1xf32>
    %33 = vector.broadcast %32 : vector<4x1xf32> to vector<4x128xf32>
    %34 = arith.addf %31, %33 : vector<4x128xf32>
    %c0_30 = arith.constant 0 : index
    %c0_31 = arith.constant 0 : index
    %c0_32 = arith.constant 0 : index
    %35 = vector.load %arg13[%c0_30, %c0_31, %c0_32] : memref<1x4x128xf32, #tpu.memory_space<vmem>>, vector<1x4x128xf32>
    %36 = vector.shape_cast %35 : vector<1x4x128xf32> to vector<4x128xf32>
    %37 = vector.shape_cast %34 : vector<4x128xf32> to vector<1x4x128xf32>
    tpu.vector_store %arg13[%c0_30, %c0_31, %c0_32], %37 {strides = array<i32>} : memref<1x4x128xf32, #tpu.memory_space<vmem>>, vector<1x4x128xf32>,
    return
  }
  func.func @transform_0(%arg0: i32, %arg1: i32) -> (i32, i32, i32) {
    %c0_i32 = arith.constant 0 : i32
    %c0_i32_0 = arith.constant 0 : i32
    return %arg0, %c0_i32, %arg1 : i32, i32, i32
  }
  func.func @transform_1(%arg0: i32, %arg1: i32) -> (i32, i32) {
    %c0_i32 = arith.constant 0 : i32
    %c0_i32_0 = arith.constant 0 : i32
    %c0_i32_1 = arith.constant 0 : i32
    return %c0_i32, %c0_i32_0 : i32, i32
  }
  func.func @transform_2(%arg0: i32, %arg1: i32) -> (i32, i32) {
    %c0_i32 = arith.constant 0 : i32
    %c0_i32_0 = arith.constant 0 : i32
    %c0_i32_1 = arith.constant 0 : i32
    return %c0_i32, %c0_i32_0 : i32, i32
  }
  func.func @transform_3(%arg0: i32, %arg1: i32) -> (i32, i32) {
    %c0_i32 = arith.constant 0 : i32
    %c0_i32_0 = arith.constant 0 : i32
    %c0_i32_1 = arith.constant 0 : i32
    return %c0_i32, %c0_i32_0 : i32, i32
  }
  func.func @transform_4(%arg0: i32, %arg1: i32) -> (i32, i32) {
    %c0_i32 = arith.constant 0 : i32
    %c0_i32_0 = arith.constant 0 : i32
    %c0_i32_1 = arith.constant 0 : i32
    return %c0_i32, %c0_i32_0 : i32, i32
  }
  func.func @transform_5(%arg0: i32, %arg1: i32) -> (i32, i32) {
    %c0_i32 = arith.constant 0 : i32
    %c0_i32_0 = arith.constant 0 : i32
    %c0_i32_1 = arith.constant 0 : i32
    return %c0_i32, %c0_i32_0 : i32, i32
  }
  func.func @transform_6(%arg0: i32, %arg1: i32) -> (i32, i32) {
    %c0_i32 = arith.constant 0 : i32
    %c0_i32_0 = arith.constant 0 : i32
    %c0_i32_1 = arith.constant 0 : i32
    return %c0_i32, %c0_i32_0 : i32, i32
  }
  func.func @transform_7(%arg0: i32, %arg1: i32) -> (i32, i32) {
    %c0_i32 = arith.constant 0 : i32
    %c0_i32_0 = arith.constant 0 : i32
    %c0_i32_1 = arith.constant 0 : i32
    return %c0_i32, %c0_i32_0 : i32, i32
  }
  func.func @transform_8(%arg0: i32, %arg1: i32) -> (i32, i32) {
    %c0_i32 = arith.constant 0 : i32
    %c0_i32_0 = arith.constant 0 : i32
    %c0_i32_1 = arith.constant 0 : i32
    return %c0_i32, %c0_i32_0 : i32, i32
  }
  func.func @transform_9(%arg0: i32, %arg1: i32) -> (i32, i32) {
    %c0_i32 = arith.constant 0 : i32
    %c0_i32_0 = arith.constant 0 : i32
    %c0_i32_1 = arith.constant 0 : i32
    return %c0_i32, %c0_i32_0 : i32, i32
  }
  func.func @transform_10(%arg0: i32, %arg1: i32) -> (i32, i32) {
    %c0_i32 = arith.constant 0 : i32
    %c0_i32_0 = arith.constant 0 : i32
    %c0_i32_1 = arith.constant 0 : i32
    return %c0_i32, %c0_i32_0 : i32, i32
  }
  func.func @transform_11(%arg0: i32, %arg1: i32) -> (i32, i32, i32) {
    %c0_i32 = arith.constant 0 : i32
    %c0_i32_0 = arith.constant 0 : i32
    return %arg0, %c0_i32, %arg1 : i32, i32, i32
  }
}

</mosaic_0001>

<llo_original>
// kernel: tpu_custom_call.1
$region0: #{tpu_custom_call.1}
  #allocation0 [shape = 'u32[]', space=smem, size = 0x4, offset = 0x4, fixed_abs, tag = 'smem constant byte address 0x4 - core index']
  #allocation1 [shape = 'u32[144,128]{1,0:T(1,128)}', space=vmem, size = 0x12000, scoped, tag = 'internal scratch']
  %s0 = inlined_call_operand.vmem [shape: f32[2,4,16], index: 0, kind: input, shape index: {}]
  %s1 = inlined_call_operand.vmem [shape: f32[64,4], index: 1, kind: input, shape index: {}]
  %s2 = inlined_call_operand.vmem [shape: f32[64,1], index: 2, kind: input, shape index: {}]
  %s3 = inlined_call_operand.vmem [shape: f32[128,64], index: 3, kind: input, shape index: {}]
  %s4 = inlined_call_operand.vmem [shape: f32[128,1], index: 4, kind: input, shape index: {}]
  %s5 = inlined_call_operand.hbm [shape: f32[256,128], index: 5, kind: input, shape index: {}]
  %s6 = inlined_call_operand.vmem [shape: f32[256,1], index: 6, kind: input, shape index: {}]
  %s7 = inlined_call_operand.vmem [shape: f32[512,256], index: 7, kind: input, shape index: {}]
  %s8 = inlined_call_operand.vmem [shape: f32[512,1], index: 8, kind: input, shape index: {}]
  %s9 = inlined_call_operand.vmem [shape: f32[4,512], index: 9, kind: input, shape index: {}]
  %s10 = inlined_call_operand.vmem [shape: f32[4,1], index: 10, kind: input, shape index: {}]
  %s11 = inlined_call_operand.hbm [shape: f32[2,4,16], index: 11, kind: output, shape index: {}]
  %s12 = sld [smem:[#allocation0]]
  $region81: #{tpu_custom_call.1} parent=0
    _
  %s14 = ssub.s32 1, %s12
  %s15 = scalar_select 0, %s14, %s12
  $region1: #{tpu_custom_call.1} parent=0
    #allocation2 [shape = 'u8[131072]{0}', space=vmem, size = 0x20000, scoped, tag = 'input window, operand 5, single buffered']
    #allocation3 [shape = 's32[2]{0}', space=sflag, size = 0x8, scoped, tag = 'scoped memory for tpu_custom_call.1']
    #allocation4 [shape = 's32[2]{0}', space=sflag, size = 0x8, scoped, tag = 'scoped memory for tpu_custom_call.1']
    #allocation5 [shape = 'u8[4096]{0}', space=vmem, size = 0x1000, scoped, tag = 'output window, operand 0']
    %16 = vsyncpa [#allocation3], 0
    %17 = vsyncpa [#allocation4], 0
    %s18 = scalar_lea.sflag [#allocation4], 1
    %19 = vsyncpa %s18, 0
    loop: start=0, step=1, limit=4
    $region2: #{tpu_custom_call.1} parent=1 // loop_pre_header
      _
    $region3: #{tpu_custom_call.1} parent=1 // loop_header
      %s21 = sphi 0, %s25
      %p22 = scmp.ge.s32.totalorder %s21, 4
      %s28 = sphi 0, %s40
      %s29 = sphi 0, %s36
      %s30 = sphi 0, %s28
      %s31 = sphi 0, %s29
      %s32 = sphi 0, %s30
      %s33 = sphi 0, %s31
      %s45 = sphi 0, %s47
      %s48 = sphi 0, %s45
      %s49 = sphi 0, %s48
      %s65 = sphi 0, %s49
      %s69 = sphi 0, %s69
      %s71 = sphi 0, %s69
      %s72 = sphi 0, %s71
      %s86 = sphi 0, %s72
      %s90 = sphi 0, %s90
      %s92 = sphi 0, %s90
      %s93 = sphi 0, %s92
      %s107 = sphi 0, %s93
      %s111 = sphi 0, %s111
      %s113 = sphi 0, %s111
      %s114 = sphi 0, %s113
      %s128 = sphi 0, %s114
      %s132 = sphi 0, %s132
      %s134 = sphi 0, %s132
      %s135 = sphi 0, %s134
      %s149 = sphi 0, %s135
      %s153 = sphi 0, %s153
      %s155 = sphi 0, %s153
      %s156 = sphi 0, %s155
      %s170 = sphi 0, %s156
      %s174 = sphi 0, %s174
      %s176 = sphi 0, %s174
      %s177 = sphi 0, %s176
      %s191 = sphi 0, %s177
      %s195 = sphi 0, %s195
      %s197 = sphi 0, %s195
      %s198 = sphi 0, %s197
      %s212 = sphi 0, %s198
      %s216 = sphi 0, %s216
      %s218 = sphi 0, %s216
      %s219 = sphi 0, %s218
      %s233 = sphi 0, %s219
      %s237 = sphi 0, %s237
      %s239 = sphi 0, %s237
      %s240 = sphi 0, %s239
      %s254 = sphi 0, %s240
      %s258 = sphi 0, %s258
      %s260 = sphi 0, %s258
      %s261 = sphi 0, %s260
      %s275 = sphi 0, %s261
      %s283 = sphi 0, %s285
      %s286 = sphi 0, %s283
      %s287 = sphi 0, %s286
      %s303 = sphi 0, %s287
    $region4: #{tpu_custom_call.1} parent=1 // loop_header_branch
      %24 = sbr.rel (%p22) target = $region8
    $region5: #{tpu_custom_call.1} parent=1 // loop_body
      %s26 = ssub.s32 %s21, 1
      %s27 = ssub.s32 %s21, 2
      %s34 = sadd.s32 1, %s29
      %p35 = scmp.ge.s32.totalorder %s34, 1
      %s36 = scalar_select %p35, 0, %s34
      %s37 = sadd.s32 1, %s28
      %s38 = scalar_select %p35, %s37, %s28
      %p39 = scmp.ge.s32.totalorder %s38, 2
      %s40 = scalar_select %p39, 0, %s38
      %s41 = ssub.s32 %s28, %s40
      %s42 = ssub.s32 %s29, %s36
      %s43 = sor.u32 %s41, %s42
      %p44 = scmp.eq.s32.totalorder %s43, 0
      %s46 = sadd.s32 %s45, 1
      %s47 = scalar_select %p44, %s45, %s46
      %p50 = pneg %p44
      %p51 = scmp.eq.s32.totalorder %s21, 1
      %p52 = por %p50, %p51
      %p53 = scmp.ne.s32.totalorder %s45, %s48
      %p54 = scmp.eq.s32.totalorder %s21, 0
      %p55 = por %p53, %p54
      %p56 = scmp.ne.s32.totalorder %s45, %s48
      %p57 = scmp.eq.s32.totalorder %s26, 1
      %p58 = por %p56, %p57
      %p59 = scmp.ne.s32.totalorder %s48, %s49
      %p60 = scmp.eq.s32.totalorder %s26, 0
      %p61 = por %p59, %p60
      %p62 = scmp.ne.s32.totalorder %s48, %s49
      %p63 = scmp.eq.s32.totalorder %s27, 1
      %p64 = por %p62, %p63
      %p66 = scmp.ne.s32.totalorder %s49, %s65
      %p67 = scmp.eq.s32.totalorder %s27, 0
      %p68 = por %p66, %p67
      %s70 = sadd.s32 %s69, 1
      %p73 = scmp.eq.s32.totalorder %s21, 1
      %p74 = scmp.ne.s32.totalorder %s69, %s71
      %p75 = scmp.eq.s32.totalorder %s21, 0
      %p76 = por %p74, %p75
      %p77 = scmp.ne.s32.totalorder %s69, %s71
      %p78 = scmp.eq.s32.totalorder %s26, 1
      %p79 = por %p77, %p78
      %p80 = scmp.ne.s32.totalorder %s71, %s72
      %p81 = scmp.eq.s32.totalorder %s26, 0
      %p82 = por %p80, %p81
      %p83 = scmp.ne.s32.totalorder %s71, %s72
      %p84 = scmp.eq.s32.totalorder %s27, 1
      %p85 = por %p83, %p84
      %p87 = scmp.ne.s32.totalorder %s72, %s86
      %p88 = scmp.eq.s32.totalorder %s27, 0
      %p89 = por %p87, %p88
      %s91 = sadd.s32 %s90, 1
      %p94 = scmp.eq.s32.totalorder %s21, 1
      %p95 = scmp.ne.s32.totalorder %s90, %s92
      %p96 = scmp.eq.s32.totalorder %s21, 0
      %p97 = por %p95, %p96
      %p98 = scmp.ne.s32.totalorder %s90, %s92
      %p99 = scmp.eq.s32.totalorder %s26, 1
      %p100 = por %p98, %p99
      %p101 = scmp.ne.s32.totalorder %s92, %s93
      %p102 = scmp.eq.s32.totalorder %s26, 0
      %p103 = por %p101, %p102
      %p104 = scmp.ne.s32.totalorder %s92, %s93
      %p105 = scmp.eq.s32.totalorder %s27, 1
      %p106 = por %p104, %p105
      %p108 = scmp.ne.s32.totalorder %s93, %s107
      %p109 = scmp.eq.s32.totalorder %s27, 0
      %p110 = por %p108, %p109
      %s112 = sadd.s32 %s111, 1
      %p115 = scmp.eq.s32.totalorder %s21, 1
      %p116 = scmp.ne.s32.totalorder %s111, %s113
      %p117 = scmp.eq.s32.totalorder %s21, 0
      %p118 = por %p116, %p117
      %p119 = scmp.ne.s32.totalorder %s111, %s113
      %p120 = scmp.eq.s32.totalorder %s26, 1
      %p121 = por %p119, %p120
      %p122 = scmp.ne.s32.totalorder %s113, %s114
      %p123 = scmp.eq.s32.totalorder %s26, 0
      %p124 = por %p122, %p123
      %p125 = scmp.ne.s32.totalorder %s113, %s114
      %p126 = scmp.eq.s32.totalorder %s27, 1
      %p127 = por %p125, %p126
      %p129 = scmp.ne.s32.totalorder %s114, %s128
      %p130 = scmp.eq.s32.totalorder %s27, 0
      %p131 = por %p129, %p130
      %s133 = sadd.s32 %s132, 1
      %p136 = scmp.eq.s32.totalorder %s21, 1
      %p137 = scmp.ne.s32.totalorder %s132, %s134
      %p138 = scmp.eq.s32.totalorder %s21, 0
      %p139 = por %p137, %p138
      %p140 = scmp.ne.s32.totalorder %s132, %s134
      %p141 = scmp.eq.s32.totalorder %s26, 1
      %p142 = por %p140, %p141
      %p143 = scmp.ne.s32.totalorder %s134, %s135
      %p144 = scmp.eq.s32.totalorder %s26, 0
      %p145 = por %p143, %p144
      %p146 = scmp.ne.s32.totalorder %s134, %s135
      %p147 = scmp.eq.s32.totalorder %s27, 1
      %p148 = por %p146, %p147
      %p150 = scmp.ne.s32.totalorder %s135, %s149
      %p151 = scmp.eq.s32.totalorder %s27, 0
      %p152 = por %p150, %p151
      %s154 = sadd.s32 %s153, 1
      %p157 = scmp.eq.s32.totalorder %s21, 1
      %p158 = scmp.ne.s32.totalorder %s153, %s155
      %p159 = scmp.eq.s32.totalorder %s21, 0
      %p160 = por %p158, %p159
      %p161 = scmp.ne.s32.totalorder %s153, %s155
      %p162 = scmp.eq.s32.totalorder %s26, 1
      %p163 = por %p161, %p162
      %p164 = scmp.ne.s32.totalorder %s155, %s156
      %p165 = scmp.eq.s32.totalorder %s26, 0
      %p166 = por %p164, %p165
      %p167 = scmp.ne.s32.totalorder %s155, %s156
      %p168 = scmp.eq.s32.totalorder %s27, 1
      %p169 = por %p167, %p168
      %p171 = scmp.ne.s32.totalorder %s156, %s170
      %p172 = scmp.eq.s32.totalorder %s27, 0
      %p173 = por %p171, %p172
      %s175 = sadd.s32 %s174, 1
      %p178 = scmp.eq.s32.totalorder %s21, 1
      %p179 = scmp.ne.s32.totalorder %s174, %s176
      %p180 = scmp.eq.s32.totalorder %s21, 0
      %p181 = por %p179, %p180
      %p182 = scmp.ne.s32.totalorder %s174, %s176
      %p183 = scmp.eq.s32.totalorder %s26, 1
      %p184 = por %p182, %p183
      %p185 = scmp.ne.s32.totalorder %s176, %s177
      %p186 = scmp.eq.s32.totalorder %s26, 0
      %p187 = por %p185, %p186
      %p188 = scmp.ne.s32.totalorder %s176, %s177
      %p189 = scmp.eq.s32.totalorder %s27, 1
      %p190 = por %p188, %p189
      %p192 = scmp.ne.s32.totalorder %s177, %s191
      %p193 = scmp.eq.s32.totalorder %s27, 0
      %p194 = por %p192, %p193
      %s196 = sadd.s32 %s195, 1
      %p199 = scmp.eq.s32.totalorder %s21, 1
      %p200 = scmp.ne.s32.totalorder %s195, %s197
      %p201 = scmp.eq.s32.totalorder %s21, 0
      %p202 = por %p200, %p201
      %p203 = scmp.ne.s32.totalorder %s195, %s197
      %p204 = scmp.eq.s32.totalorder %s26, 1
      %p205 = por %p203, %p204
      %p206 = scmp.ne.s32.totalorder %s197, %s198
      %p207 = scmp.eq.s32.totalorder %s26, 0
      %p208 = por %p206, %p207
      %p209 = scmp.ne.s32.totalorder %s197, %s198
      %p210 = scmp.eq.s32.totalorder %s27, 1
      %p211 = por %p209, %p210
      %p213 = scmp.ne.s32.totalorder %s198, %s212
      %p214 = scmp.eq.s32.totalorder %s27, 0
      %p215 = por %p213, %p214
      %s217 = sadd.s32 %s216, 1
      %p220 = scmp.eq.s32.totalorder %s21, 1
      %p221 = scmp.ne.s32.totalorder %s216, %s218
      %p222 = scmp.eq.s32.totalorder %s21, 0
      %p223 = por %p221, %p222
      %p224 = scmp.ne.s32.totalorder %s216, %s218
      %p225 = scmp.eq.s32.totalorder %s26, 1
      %p226 = por %p224, %p225
      %p227 = scmp.ne.s32.totalorder %s218, %s219
      %p228 = scmp.eq.s32.totalorder %s26, 0
      %p229 = por %p227, %p228
      %p230 = scmp.ne.s32.totalorder %s218, %s219
      %p231 = scmp.eq.s32.totalorder %s27, 1
      %p232 = por %p230, %p231
      %p234 = scmp.ne.s32.totalorder %s219, %s233
      %p235 = scmp.eq.s32.totalorder %s27, 0
      %p236 = por %p234, %p235
      %s238 = sadd.s32 %s237, 1
      %p241 = scmp.eq.s32.totalorder %s21, 1
      %p242 = scmp.ne.s32.totalorder %s237, %s239
      %p243 = scmp.eq.s32.totalorder %s21, 0
      %p244 = por %p242, %p243
      %p245 = scmp.ne.s32.totalorder %s237, %s239
      %p246 = scmp.eq.s32.totalorder %s26, 1
      %p247 = por %p245, %p246
      %p248 = scmp.ne.s32.totalorder %s239, %s240
      %p249 = scmp.eq.s32.totalorder %s26, 0
      %p250 = por %p248, %p249
      %p251 = scmp.ne.s32.totalorder %s239, %s240
      %p252 = scmp.eq.s32.totalorder %s27, 1
      %p253 = por %p251, %p252
      %p255 = scmp.ne.s32.totalorder %s240, %s254
      %p256 = scmp.eq.s32.totalorder %s27, 0
      %p257 = por %p255, %p256
      %s259 = sadd.s32 %s258, 1
      %p262 = scmp.eq.s32.totalorder %s21, 1
      %p263 = scmp.ne.s32.totalorder %s258, %s260
      %p264 = scmp.eq.s32.totalorder %s21, 0
      %p265 = por %p263, %p264
      %p266 = scmp.ne.s32.totalorder %s258, %s260
      %p267 = scmp.eq.s32.totalorder %s26, 1
      %p268 = por %p266, %p267
      %p269 = scmp.ne.s32.totalorder %s260, %s261
      %p270 = scmp.eq.s32.totalorder %s26, 0
      %p271 = por %p269, %p270
      %p272 = scmp.ne.s32.totalorder %s260, %s261
      %p273 = scmp.eq.s32.totalorder %s27, 1
      %p274 = por %p272, %p273
      %p276 = scmp.ne.s32.totalorder %s261, %s275
      %p277 = scmp.eq.s32.totalorder %s27, 0
      %p278 = por %p276, %p277
      %s279 = ssub.s32 %s28, %s40
      %s280 = ssub.s32 %s29, %s36
      %s281 = sor.u32 %s279, %s280
      %p282 = scmp.eq.s32.totalorder %s281, 0
      %s284 = sadd.s32 %s283, 1
      %s285 = scalar_select %p282, %s283, %s284
      %p288 = pneg %p282
      %p289 = scmp.eq.s32.totalorder %s21, 1
      %p290 = por %p288, %p289
      %p291 = scmp.ne.s32.totalorder %s283, %s286
      %p292 = scmp.eq.s32.totalorder %s21, 0
      %p293 = por %p291, %p292
      %p294 = scmp.ne.s32.totalorder %s283, %s286
      %p295 = scmp.eq.s32.totalorder %s26, 1
      %p296 = por %p294, %p295
      %p297 = scmp.ne.s32.totalorder %s286, %s287
      %p298 = scmp.eq.s32.totalorder %s26, 0
      %p299 = por %p297, %p298
      %p300 = scmp.ne.s32.totalorder %s286, %s287
      %p301 = scmp.eq.s32.totalorder %s27, 1
      %p302 = por %p300, %p301
      %p304 = scmp.ne.s32.totalorder %s287, %s303
      %p305 = scmp.eq.s32.totalorder %s27, 0
      %p306 = por %p304, %p305
      %p307 = scmp.le.s32.totalorder 1, %s21
      %p308 = scmp.lt.s32.totalorder %s21, 3
      %p309 = pnand %p307, %p308
      %p310 = pneg %p309
      // Predicated region
      $region9: #{tpu_custom_call.1} parent=5 // pred_check
        _
      $region10: #{tpu_custom_call.1} parent=5 // pred_check_branch
        %312 = sbr.rel (%p309) target = $region12
      $region11: #{tpu_custom_call.1} parent=5 // pred_region
        %s313 = ssub.s32 %s21, 1
        // Predicated region
        $region13: #{tpu_custom_call.1} parent=11 // pred_check
          %p314 = pneg %p82
        $region14: #{tpu_custom_call.1} parent=11 // pred_check_branch
          %316 = sbr.rel (%p314) target = $region16
        $region15: #{tpu_custom_call.1} parent=11 // pred_region
          _
        $region16: #{tpu_custom_call.1} parent=11 // pred_fallthru
          _
        // Predicated region
        $region17: #{tpu_custom_call.1} parent=11 // pred_check
          %p317 = pneg %p103
        $region18: #{tpu_custom_call.1} parent=11 // pred_check_branch
          %319 = sbr.rel (%p317) target = $region20
        $region19: #{tpu_custom_call.1} parent=11 // pred_region
          _
        $region20: #{tpu_custom_call.1} parent=11 // pred_fallthru
          _
        // Predicated region
        $region21: #{tpu_custom_call.1} parent=11 // pred_check
          %p320 = pneg %p124
        $region22: #{tpu_custom_call.1} parent=11 // pred_check_branch
          %322 = sbr.rel (%p320) target = $region24
        $region23: #{tpu_custom_call.1} parent=11 // pred_region
          _
        $region24: #{tpu_custom_call.1} parent=11 // pred_fallthru
          _
        // Predicated region
        $region25: #{tpu_custom_call.1} parent=11 // pred_check
          %p323 = pneg %p145
        $region26: #{tpu_custom_call.1} parent=11 // pred_check_branch
          %325 = sbr.rel (%p323) target = $region28
        $region27: #{tpu_custom_call.1} parent=11 // pred_region
          _
        $region28: #{tpu_custom_call.1} parent=11 // pred_fallthru
          _
        // Predicated region
        $region29: #{tpu_custom_call.1} parent=11 // pred_check
          %p326 = pneg %p166
        $region30: #{tpu_custom_call.1} parent=11 // pred_check_branch
          %328 = sbr.rel (%p326) target = $region32
        $region31: #{tpu_custom_call.1} parent=11 // pred_region
          %s330 = ssub.s32 4096, 4096
          %331 = vsyncadd [#allocation3], %s330
          %s332 = sshll.u32 [#allocation2], 4
          %s333 = int_to_ptr.vmem [resolvable:$true] %s332
          %338 = dma.hbm_to_vmem [thread:$0]  %s5, 4096, %s333, [#allocation3], 128, 128, 8
        $region32: #{tpu_custom_call.1} parent=11 // pred_fallthru
          _
        // Predicated region
        $region33: #{tpu_custom_call.1} parent=11 // pred_check
          %p339 = pneg %p187
        $region34: #{tpu_custom_call.1} parent=11 // pred_check_branch
          %341 = sbr.rel (%p339) target = $region36
        $region35: #{tpu_custom_call.1} parent=11 // pred_region
          _
        $region36: #{tpu_custom_call.1} parent=11 // pred_fallthru
          _
        // Predicated region
        $region37: #{tpu_custom_call.1} parent=11 // pred_check
          %p342 = pneg %p208
        $region38: #{tpu_custom_call.1} parent=11 // pred_check_branch
          %344 = sbr.rel (%p342) target = $region40
        $region39: #{tpu_custom_call.1} parent=11 // pred_region
          _
        $region40: #{tpu_custom_call.1} parent=11 // pred_fallthru
          _
        // Predicated region
        $region41: #{tpu_custom_call.1} parent=11 // pred_check
          %p345 = pneg %p229
        $region42: #{tpu_custom_call.1} parent=11 // pred_check_branch
          %347 = sbr.rel (%p345) target = $region44
        $region43: #{tpu_custom_call.1} parent=11 // pred_region
          _
        $region44: #{tpu_custom_call.1} parent=11 // pred_fallthru
          _
        // Predicated region
        $region45: #{tpu_custom_call.1} parent=11 // pred_check
          %p348 = pneg %p250
        $region46: #{tpu_custom_call.1} parent=11 // pred_check_branch
          %350 = sbr.rel (%p348) target = $region48
        $region47: #{tpu_custom_call.1} parent=11 // pred_region
          _
        $region48: #{tpu_custom_call.1} parent=11 // pred_fallthru
          _
        // Predicated region
        $region49: #{tpu_custom_call.1} parent=11 // pred_check
          %p351 = pneg %p271
        $region50: #{tpu_custom_call.1} parent=11 // pred_check_branch
          %353 = sbr.rel (%p351) target = $region52
        $region51: #{tpu_custom_call.1} parent=11 // pred_region
          _
        $region52: #{tpu_custom_call.1} parent=11 // pred_fallthru
          _
      $region12: #{tpu_custom_call.1} parent=5 // pred_fallthru
        _
      %p354 = scmp.lt.s32.totalorder %s21, 2
      // Predicated region
      $region53: #{tpu_custom_call.1} parent=5 // pred_check
        %p355 = pneg %p354
      $region54: #{tpu_custom_call.1} parent=5 // pred_check_branch
        %357 = sbr.rel (%p355) target = $region56
      $region55: #{tpu_custom_call.1} parent=5 // pred_region
        // Predicated region
        $region57: #{tpu_custom_call.1} parent=55 // pred_check
          %p358 = pneg %p55
        $region58: #{tpu_custom_call.1} parent=55 // pred_check_branch
          %360 = sbr.rel (%p358) target = $region60
        $region59: #{tpu_custom_call.1} parent=55 // pred_region
          %p361 = scmp.lt.s32.totalorder %s28, 1
          %s362 = scalar_select %p361, %s28, 1
          %p363 = scmp.lt.s32.totalorder %s29, 0
          %s364 = scalar_select %p363, %s29, 0
          %s365 = sadd.s32 %s364, %s362
          %s366 = smul.addr %s365, 4
          %s367 = scalar_lea.vmem %s0, %s366
        $region60: #{tpu_custom_call.1} parent=55 // pred_fallthru
          _
      $region56: #{tpu_custom_call.1} parent=5 // pred_fallthru
        _
      %p368 = scmp.le.s32.totalorder 1, %s21
      %p369 = scmp.lt.s32.totalorder %s21, 3
      %p370 = pnand %p368, %p369
      %p371 = pneg %p370
      // Predicated region
      $region61: #{tpu_custom_call.1} parent=5 // pred_check
        _
      $region62: #{tpu_custom_call.1} parent=5 // pred_check_branch
        %373 = sbr.rel (%p370) target = $region64
      $region63: #{tpu_custom_call.1} parent=5 // pred_region
        %s374 = ssub.s32 %s21, 1
        // Predicated region
        $region65: #{tpu_custom_call.1} parent=63 // pred_check
          %p375 = pneg %p166
        $region66: #{tpu_custom_call.1} parent=63 // pred_check_branch
          %377 = sbr.rel (%p375) target = $region68
        $region67: #{tpu_custom_call.1} parent=63 // pred_region
          %378 = dma.done [#allocation3], 4096
        $region68: #{tpu_custom_call.1} parent=63 // pred_fallthru
          _
        %p379 = scmp.lt.s32.totalorder %s30, 1
        %s380 = scalar_select %p379, %s30, 1
        %p381 = scmp.lt.s32.totalorder %s31, 0
        %s382 = scalar_select %p381, %s31, 0
        %s383 = sadd.s32 %s382, %s380
        %s384 = smul.addr %s383, 4
        %s385 = scalar_lea.vmem %s0, %s384
        %p386 = pneg %p61
        %p387 = pneg %p58
        %p388 = pneg %p82
        %p389 = pneg %p79
        %p390 = pneg %p103
        %p391 = pneg %p100
        %p392 = pneg %p124
        %p393 = pneg %p121
        %p394 = pneg %p145
        %p395 = pneg %p142
        %p396 = pneg %p166
        %p397 = pneg %p163
        %p398 = pneg %p187
        %p399 = pneg %p184
        %p400 = pneg %p208
        %p401 = pneg %p205
        %p402 = pneg %p229
        %p403 = pneg %p226
        %p404 = pneg %p250
        %p405 = pneg %p247
        %p406 = pneg %p271
        %p407 = pneg %p268
        %p408 = pneg %p299
        %p409 = pneg %p296
        %s410 = sand.u32 %s286, 1
        %s411 = scalar_lea.sflag [#allocation4], %s410
        %s412 = sand.u32 %s286, 1
        %s413 = smul.addr %s412, 4
        %s414 = scalar_lea.vmem [#allocation5], %s413
        %p415 = scmp.lt.s32.totalorder %s30, 1
        %s416 = scalar_select %p415, %s30, 1
        %p417 = scmp.lt.s32.totalorder %s31, 0
        %s418 = scalar_select %p417, %s31, 0
        %s419 = sadd.s32 %s418, %s416
        %s420 = smul.addr %s419, 4
        %s421 = scalar_lea.vmem %s0, %s420
        %v422 = vld [vmem:[%s421] sm:$0xf]
        %v423 = vld [vmem:[%s1] sm:$0xff]
        %v424 = vld [vmem:[%s1 + $0x8] sm:$0xff]
        %v425 = vld [vmem:[%s1 + $0x10] sm:$0xff]
        %v426 = vld [vmem:[%s1 + $0x18] sm:$0xff]
        %v427 = vld [vmem:[%s1 + $0x20] sm:$0xff]
        %v428 = vld [vmem:[%s1 + $0x28] sm:$0xff]
        %v429 = vld [vmem:[%s1 + $0x30] sm:$0xff]
        %v430 = vld [vmem:[%s1 + $0x38] sm:$0xff]
        %v431 = vld [vmem:[%s2] sm:$0xff]
        %v432 = vld [vmem:[%s2 + $0x8] sm:$0xff]
        %v433 = vld [vmem:[%s2 + $0x10] sm:$0xff]
        %v434 = vld [vmem:[%s2 + $0x18] sm:$0xff]
        %v435 = vld [vmem:[%s2 + $0x20] sm:$0xff]
        %v436 = vld [vmem:[%s2 + $0x28] sm:$0xff]
        %v437 = vld [vmem:[%s2 + $0x30] sm:$0xff]
        %v438 = vld [vmem:[%s2 + $0x38] sm:$0xff]
        %440 = vset.pattern.permute.xlu0 0
        %441 = vperm.xlu0 %440, %v431
        %v442 = vpop.permute.xlu0 %441
        %445 = vset.pattern.permute.xlu0 0
        %446 = vperm.xlu0 %445, %v432
        %v447 = vpop.permute.xlu0 %446
        %450 = vset.pattern.permute.xlu0 0
        %451 = vperm.xlu0 %450, %v433
        %v452 = vpop.permute.xlu0 %451
        %455 = vset.pattern.permute.xlu0 0
        %456 = vperm.xlu0 %455, %v434
        %v457 = vpop.permute.xlu0 %456
        %460 = vset.pattern.permute.xlu0 0
        %461 = vperm.xlu0 %460, %v435
        %v462 = vpop.permute.xlu0 %461
        %465 = vset.pattern.permute.xlu0 0
        %466 = vperm.xlu0 %465, %v436
        %v467 = vpop.permute.xlu0 %466
        %470 = vset.pattern.permute.xlu0 0
        %471 = vperm.xlu0 %470, %v437
        %v472 = vpop.permute.xlu0 %471
        %475 = vset.pattern.permute.xlu0 0
        %476 = vperm.xlu0 %475, %v438
        %v477 = vpop.permute.xlu0 %476
        %vm479 = vcmask 31744
        %v481 = vsel %vm479, %v423, 0
        %v484 = vsel %vm479, %v424, 0
        %v487 = vsel %vm479, %v425, 0
        %v490 = vsel %vm479, %v426, 0
        %v493 = vsel %vm479, %v427, 0
        %v496 = vsel %vm479, %v428, 0
        %v499 = vsel %vm479, %v429, 0
        %v502 = vsel %vm479, %v430, 0
        %vm504 = vcmask 1043456
        %v506 = vsel %vm504, %v422, 0
        %508 = vmatprep.subr.mxu0 0.0
        %509 = vmatpush1.msra.mxu0 %v506
        %510 = vmatprep.subr.mxu0 0.0
        %511 = vmatpush1.msra.mxu0 0.0
        %512 = vmatprep.subr.mxu0 0.0
        %513 = vmatpush1.msra.mxu0 0.0
        %514 = vmatprep.subr.mxu0 0.0
        %515 = vmatpush1.msra.mxu0 0.0
        %516 = vmatprep.subr.mxu0 0.0
        %517 = vmatpush1.msra.mxu0 0.0
        %518 = vmatprep.subr.mxu0 0.0
        %519 = vmatpush1.msra.mxu0 0.0
        %520 = vmatprep.subr.mxu0 0.0
        %521 = vmatpush1.msra.mxu0 0.0
        %522 = vmatprep.subr.mxu0 0.0
        %523 = vmatpush1.msra.mxu0 0.0
        %524 = vmatprep.subr.mxu0 0.0
        %525 = vmatpush1.msra.mxu0 0.0
        %526 = vmatprep.subr.mxu0 0.0
        %527 = vmatpush1.msra.mxu0 0.0
        %528 = vmatprep.subr.mxu0 0.0
        %529 = vmatpush1.msra.mxu0 0.0
        %530 = vmatprep.subr.mxu0 0.0
        %531 = vmatpush1.msra.mxu0 0.0
        %532 = vmatprep.subr.mxu0 0.0
        %533 = vmatpush1.msra.mxu0 0.0
        %534 = vmatprep.subr.mxu0 0.0
        %535 = vmatpush1.msra.mxu0 0.0
        %536 = vmatprep.subr.mxu0 0.0
        %537 = vmatpush1.msra.mxu0 0.0
        %538 = vmatprep.subr.mxu0 0.0
        %539 = vmatpush1.msra.mxu0 0.0
        %540 = vmatprep.subr.mxu0 0.0
        %541 = vmatpush1.msra.mxu0 0.0
        %542 = vmatprep.subr.mxu0 0.0
        %543 = vmatpush1.msra.mxu0 0.0
        %544 = vmatprep.subr.mxu0 0.0
        %545 = vmatpush1.msra.mxu0 0.0
        %546 = vmatprep.subr.mxu0 0.0
        %547 = vmatpush1.msra.mxu0 0.0
        %548 = vmatprep.subr.mxu0 0.0
        %549 = vmatpush1.msra.mxu0 0.0
        %550 = vmatprep.subr.mxu0 0.0
        %551 = vmatpush1.msra.mxu0 0.0
        %552 = vmatprep.subr.mxu0 0.0
        %553 = vmatpush1.msra.mxu0 0.0
        %554 = vmatprep.subr.mxu0 0.0
        %555 = vmatpush1.msra.mxu0 0.0
        %556 = vmatprep.subr.mxu0 0.0
        %557 = vmatpush1.msra.mxu0 0.0
        %558 = vmatprep.subr.mxu0 0.0
        %559 = vmatpush1.msra.mxu0 0.0
        %560 = vmatprep.subr.mxu0 0.0
        %561 = vmatpush1.msra.mxu0 0.0
        %562 = vmatprep.subr.mxu0 0.0
        %563 = vmatpush1.msra.mxu0 0.0
        %564 = vmatprep.subr.mxu0 0.0
        %565 = vmatpush1.msra.mxu0 0.0
        %566 = vmatprep.subr.mxu0 0.0
        %567 = vmatpush1.msra.mxu0 0.0
        %568 = vmatprep.subr.mxu0 0.0
        %569 = vmatpush1.msra.mxu0 0.0
        %570 = vmatprep.subr.mxu0 0.0
        %571 = vmatpush1.msra.mxu0 0.0
        %572 = vmatprep.mubr.f32.mxu0 0.0
        %573 = vmatmul.mubr.f32.gmra.mrb[0].mxu0 %v481
        %v574 = vpop.f32.mrb[0].mxu0
        %v575 = vadd.f32 %v442, %v574
        %v576 = vpop.f32.mrb[0].mxu0
        %577 = vmatprep.mubr.f32.mxu0 0.0
        %578 = vmatmul.mubr.f32.gmra.mrb[0].mxu0 %v484
        %v579 = vpop.f32.mrb[0].mxu0
        %v580 = vadd.f32 %v447, %v579
        %v581 = vpop.f32.mrb[0].mxu0
        %582 = vmatprep.mubr.f32.mxu0 0.0
        %583 = vmatmul.mubr.f32.gmra.mrb[0].mxu0 %v487
        %v584 = vpop.f32.mrb[0].mxu0
        %v585 = vadd.f32 %v452, %v584
        %v586 = vpop.f32.mrb[0].mxu0
        %587 = vmatprep.mubr.f32.mxu0 0.0
        %588 = vmatmul.mubr.f32.gmra.mrb[0].mxu0 %v490
        %v589 = vpop.f32.mrb[0].mxu0
        %v590 = vadd.f32 %v457, %v589
        %v591 = vpop.f32.mrb[0].mxu0
        %592 = vmatprep.mubr.f32.mxu0 0.0
        %593 = vmatmul.mubr.f32.gmra.mrb[0].mxu0 %v493
        %v594 = vpop.f32.mrb[0].mxu0
        %v595 = vadd.f32 %v462, %v594
        %v596 = vpop.f32.mrb[0].mxu0
        %597 = vmatprep.mubr.f32.mxu0 0.0
        %598 = vmatmul.mubr.f32.gmra.mrb[0].mxu0 %v496
        %v599 = vpop.f32.mrb[0].mxu0
        %v600 = vadd.f32 %v467, %v599
        %v601 = vpop.f32.mrb[0].mxu0
        %602 = vmatprep.mubr.f32.mxu0 0.0
        %603 = vmatmul.mubr.f32.gmra.mrb[0].mxu0 %v499
        %v604 = vpop.f32.mrb[0].mxu0
        %v605 = vadd.f32 %v472, %v604
        %v606 = vpop.f32.mrb[0].mxu0
        %607 = vmatprep.mubr.f32.mxu0 0.0
        %608 = vmatmul.mubr.f32.gmra.mrb[0].mxu0 %v502
        %v609 = vpop.f32.mrb[0].mxu0
        %v610 = vadd.f32 %v477, %v609
        %v611 = vpop.f32.mrb[0].mxu0
        %612 = vdwg.mxu0
        %v613 = vmax.f32 %v575, 0.0
        %v614 = vmax.f32 %v580, 0.0
        %v615 = vmax.f32 %v585, 0.0
        %v616 = vmax.f32 %v590, 0.0
        %v617 = vmax.f32 %v595, 0.0
        %v618 = vmax.f32 %v600, 0.0
        %v619 = vmax.f32 %v605, 0.0
        %v620 = vmax.f32 %v610, 0.0
        %v621 = vld [vmem:[%s3] sm:$0xff]
        %v622 = vld [vmem:[%s3 + $0x8] sm:$0xff]
        %v623 = vld [vmem:[%s3 + $0x10] sm:$0xff]
        %v624 = vld [vmem:[%s3 + $0x18] sm:$0xff]
        %v625 = vld [vmem:[%s3 + $0x20] sm:$0xff]
        %v626 = vld [vmem:[%s3 + $0x28] sm:$0xff]
        %v627 = vld [vmem:[%s3 + $0x30] sm:$0xff]
        %v628 = vld [vmem:[%s3 + $0x38] sm:$0xff]
        %v629 = vld [vmem:[%s3 + $0x40] sm:$0xff]
        %v630 = vld [vmem:[%s3 + $0x48] sm:$0xff]
        %v631 = vld [vmem:[%s3 + $0x50] sm:$0xff]
        %v632 = vld [vmem:[%s3 + $0x58] sm:$0xff]
        %v633 = vld [vmem:[%s3 + $0x60] sm:$0xff]
        %v634 = vld [vmem:[%s3 + $0x68] sm:$0xff]
        %v635 = vld [vmem:[%s3 + $0x70] sm:$0xff]
        %v636 = vld [vmem:[%s3 + $0x78] sm:$0xff]
        %v637 = vld [vmem:[%s4] sm:$0xff]
        %v638 = vld [vmem:[%s4 + $0x8] sm:$0xff]
        %v639 = vld [vmem:[%s4 + $0x10] sm:$0xff]
        %v640 = vld [vmem:[%s4 + $0x18] sm:$0xff]
        %v641 = vld [vmem:[%s4 + $0x20] sm:$0xff]
        %v642 = vld [vmem:[%s4 + $0x28] sm:$0xff]
        %v643 = vld [vmem:[%s4 + $0x30] sm:$0xff]
        %v644 = vld [vmem:[%s4 + $0x38] sm:$0xff]
        %v645 = vld [vmem:[%s4 + $0x40] sm:$0xff]
        %v646 = vld [vmem:[%s4 + $0x48] sm:$0xff]
        %v647 = vld [vmem:[%s4 + $0x50] sm:$0xff]
        %v648 = vld [vmem:[%s4 + $0x58] sm:$0xff]
        %v649 = vld [vmem:[%s4 + $0x60] sm:$0xff]
        %v650 = vld [vmem:[%s4 + $0x68] sm:$0xff]
        %v651 = vld [vmem:[%s4 + $0x70] sm:$0xff]
        %v652 = vld [vmem:[%s4 + $0x78] sm:$0xff]
        %654 = vset.pattern.permute.xlu0 0
        %655 = vperm.xlu0 %654, %v637
        %v656 = vpop.permute.xlu0 %655
        %659 = vset.pattern.permute.xlu0 0
        %660 = vperm.xlu0 %659, %v638
        %v661 = vpop.permute.xlu0 %660
        %664 = vset.pattern.permute.xlu0 0
        %665 = vperm.xlu0 %664, %v639
        %v666 = vpop.permute.xlu0 %665
        %669 = vset.pattern.permute.xlu0 0
        %670 = vperm.xlu0 %669, %v640
        %v671 = vpop.permute.xlu0 %670
        %674 = vset.pattern.permute.xlu0 0
        %675 = vperm.xlu0 %674, %v641
        %v676 = vpop.permute.xlu0 %675
        %679 = vset.pattern.permute.xlu0 0
        %680 = vperm.xlu0 %679, %v642
        %v681 = vpop.permute.xlu0 %680
        %684 = vset.pattern.permute.xlu0 0
        %685 = vperm.xlu0 %684, %v643
        %v686 = vpop.permute.xlu0 %685
        %689 = vset.pattern.permute.xlu0 0
        %690 = vperm.xlu0 %689, %v644
        %v691 = vpop.permute.xlu0 %690
        %694 = vset.pattern.permute.xlu0 0
        %695 = vperm.xlu0 %694, %v645
        %v696 = vpop.permute.xlu0 %695
        %699 = vset.pattern.permute.xlu0 0
        %700 = vperm.xlu0 %699, %v646
        %v701 = vpop.permute.xlu0 %700
        %704 = vset.pattern.permute.xlu0 0
        %705 = vperm.xlu0 %704, %v647
        %v706 = vpop.permute.xlu0 %705
        %709 = vset.pattern.permute.xlu0 0
        %710 = vperm.xlu0 %709, %v648
        %v711 = vpop.permute.xlu0 %710
        %714 = vset.pattern.permute.xlu0 0
        %715 = vperm.xlu0 %714, %v649
        %v716 = vpop.permute.xlu0 %715
        %719 = vset.pattern.permute.xlu0 0
        %720 = vperm.xlu0 %719, %v650
        %v721 = vpop.permute.xlu0 %720
        %724 = vset.pattern.permute.xlu0 0
        %725 = vperm.xlu0 %724, %v651
        %v726 = vpop.permute.xlu0 %725
        %729 = vset.pattern.permute.xlu0 0
        %730 = vperm.xlu0 %729, %v652
        %v731 = vpop.permute.xlu0 %730
        %vm733 = vcmask 523264
        %v735 = vsel %vm733, %v621, 0
        %v738 = vsel %vm733, %v622, 0
        %v741 = vsel %vm733, %v623, 0
        %v744 = vsel %vm733, %v624, 0
        %v747 = vsel %vm733, %v625, 0
        %v750 = vsel %vm733, %v626, 0
        %v753 = vsel %vm733, %v627, 0
        %v756 = vsel %vm733, %v628, 0
        %v759 = vsel %vm733, %v629, 0
        %v762 = vsel %vm733, %v630, 0
        %v765 = vsel %vm733, %v631, 0
        %v768 = vsel %vm733, %v632, 0
        %v771 = vsel %vm733, %v633, 0
        %v774 = vsel %vm733, %v634, 0
        %v777 = vsel %vm733, %v635, 0
        %v780 = vsel %vm733, %v636, 0
        %782 = vmatprep.subr.mxu0 0.0
        %783 = vmatpush1.msra.mxu0 %v613
        %784 = vmatprep.subr.mxu0 0.0
        %785 = vmatpush1.msra.mxu0 %v614
        %786 = vmatprep.subr.mxu0 0.0
        %787 = vmatpush1.msra.mxu0 %v615
        %788 = vmatprep.subr.mxu0 0.0
        %789 = vmatpush1.msra.mxu0 %v616
        %790 = vmatprep.subr.mxu0 0.0
        %791 = vmatpush1.msra.mxu0 %v617
        %792 = vmatprep.subr.mxu0 0.0
        %793 = vmatpush1.msra.mxu0 %v618
        %794 = vmatprep.subr.mxu0 0.0
        %795 = vmatpush1.msra.mxu0 %v619
        %796 = vmatprep.subr.mxu0 0.0
        %797 = vmatpush1.msra.mxu0 %v620
        %798 = vmatprep.subr.mxu0 0.0
        %799 = vmatpush1.msra.mxu0 0.0
        %800 = vmatprep.subr.mxu0 0.0
        %801 = vmatpush1.msra.mxu0 0.0
        %802 = vmatprep.subr.mxu0 0.0
        %803 = vmatpush1.msra.mxu0 0.0
        %804 = vmatprep.subr.mxu0 0.0
        %805 = vmatpush1.msra.mxu0 0.0
        %806 = vmatprep.subr.mxu0 0.0
        %807 = vmatpush1.msra.mxu0 0.0
        %808 = vmatprep.subr.mxu0 0.0
        %809 = vmatpush1.msra.mxu0 0.0
        %810 = vmatprep.subr.mxu0 0.0
        %811 = vmatpush1.msra.mxu0 0.0
        %812 = vmatprep.subr.mxu0 0.0
        %813 = vmatpush1.msra.mxu0 0.0
        %814 = vmatprep.subr.mxu0 0.0
        %815 = vmatpush1.msra.mxu0 0.0
        %816 = vmatprep.subr.mxu0 0.0
        %817 = vmatpush1.msra.mxu0 0.0
        %818 = vmatprep.subr.mxu0 0.0
        %819 = vmatpush1.msra.mxu0 0.0
        %820 = vmatprep.subr.mxu0 0.0
        %821 = vmatpush1.msra.mxu0 0.0
        %822 = vmatprep.subr.mxu0 0.0
        %823 = vmatpush1.msra.mxu0 0.0
        %824 = vmatprep.subr.mxu0 0.0
        %825 = vmatpush1.msra.mxu0 0.0
        %826 = vmatprep.subr.mxu0 0.0
        %827 = vmatpush1.msra.mxu0 0.0
        %828 = vmatprep.subr.mxu0 0.0
        %829 = vmatpush1.msra.mxu0 0.0
        %830 = vmatprep.subr.mxu0 0.0
        %831 = vmatpush1.msra.mxu0 0.0
        %832 = vmatprep.subr.mxu0 0.0
        %833 = vmatpush1.msra.mxu0 0.0
        %834 = vmatprep.subr.mxu0 0.0
        %835 = vmatpush1.msra.mxu0 0.0
        %836 = vmatprep.subr.mxu0 0.0
        %837 = vmatpush1.msra.mxu0 0.0
        %838 = vmatprep.subr.mxu0 0.0
        %839 = vmatpush1.msra.mxu0 0.0
        %840 = vmatprep.subr.mxu0 0.0
        %841 = vmatpush1.msra.mxu0 0.0
        %842 = vmatprep.subr.mxu0 0.0
        %843 = vmatpush1.msra.mxu0 0.0
        %844 = vmatprep.subr.mxu0 0.0
        %845 = vmatpush1.msra.mxu0 0.0
        %846 = vmatprep.mubr.f32.mxu0 0.0
        %847 = vmatmul.mubr.f32.gmra.mrb[0].mxu0 %v735
        %v848 = vpop.f32.mrb[0].mxu0
        %v849 = vadd.f32 %v656, %v848
        %v850 = vpop.f32.mrb[0].mxu0
        %851 = vmatprep.mubr.f32.mxu0 0.0
        %852 = vmatmul.mubr.f32.gmra.mrb[0].mxu0 %v738
        %v853 = vpop.f32.mrb[0].mxu0
        %v854 = vadd.f32 %v661, %v853
        %v855 = vpop.f32.mrb[0].mxu0
        %856 = vmatprep.mubr.f32.mxu0 0.0
        %857 = vmatmul.mubr.f32.gmra.mrb[0].mxu0 %v741
        %v858 = vpop.f32.mrb[0].mxu0
        %v859 = vadd.f32 %v666, %v858
        %v860 = vpop.f32.mrb[0].mxu0
        %861 = vmatprep.mubr.f32.mxu0 0.0
        %862 = vmatmul.mubr.f32.gmra.mrb[0].mxu0 %v744
        %v863 = vpop.f32.mrb[0].mxu0
        %v864 = vadd.f32 %v671, %v863
        %v865 = vpop.f32.mrb[0].mxu0
        %866 = vmatprep.mubr.f32.mxu0 0.0
        %867 = vmatmul.mubr.f32.gmra.mrb[0].mxu0 %v747
        %v868 = vpop.f32.mrb[0].mxu0
        %v869 = vadd.f32 %v676, %v868
        %v870 = vpop.f32.mrb[0].mxu0
        %871 = vmatprep.mubr.f32.mxu0 0.0
        %872 = vmatmul.mubr.f32.gmra.mrb[0].mxu0 %v750
        %v873 = vpop.f32.mrb[0].mxu0
        %v874 = vadd.f32 %v681, %v873
        %v875 = vpop.f32.mrb[0].mxu0
        %876 = vmatprep.mubr.f32.mxu0 0.0
        %877 = vmatmul.mubr.f32.gmra.mrb[0].mxu0 %v753
        %v878 = vpop.f32.mrb[0].mxu0
        %v879 = vadd.f32 %v686, %v878
        %v880 = vpop.f32.mrb[0].mxu0
        %881 = vmatprep.mubr.f32.mxu0 0.0
        %882 = vmatmul.mubr.f32.gmra.mrb[0].mxu0 %v756
        %v883 = vpop.f32.mrb[0].mxu0
        %v884 = vadd.f32 %v691, %v883
        %v885 = vpop.f32.mrb[0].mxu0
        %886 = vmatprep.mubr.f32.mxu0 0.0
        %887 = vmatmul.mubr.f32.gmra.mrb[0].mxu0 %v759
        %v888 = vpop.f32.mrb[0].mxu0
        %v889 = vadd.f32 %v696, %v888
        %v890 = vpop.f32.mrb[0].mxu0
        %891 = vmatprep.mubr.f32.mxu0 0.0
        %892 = vmatmul.mubr.f32.gmra.mrb[0].mxu0 %v762
        %v893 = vpop.f32.mrb[0].mxu0
        %v894 = vadd.f32 %v701, %v893
        %v895 = vpop.f32.mrb[0].mxu0
        %896 = vmatprep.mubr.f32.mxu0 0.0
        %897 = vmatmul.mubr.f32.gmra.mrb[0].mxu0 %v765
        %v898 = vpop.f32.mrb[0].mxu0
        %v899 = vadd.f32 %v706, %v898
        %v900 = vpop.f32.mrb[0].mxu0
        %901 = vmatprep.mubr.f32.mxu0 0.0
        %902 = vmatmul.mubr.f32.gmra.mrb[0].mxu0 %v768
        %v903 = vpop.f32.mrb[0].mxu0
        %v904 = vadd.f32 %v711, %v903
        %v905 = vpop.f32.mrb[0].mxu0
        %906 = vmatprep.mubr.f32.mxu0 0.0
        %907 = vmatmul.mubr.f32.gmra.mrb[0].mxu0 %v771
        %v908 = vpop.f32.mrb[0].mxu0
        %v909 = vadd.f32 %v716, %v908
        %v910 = vpop.f32.mrb[0].mxu0
        %911 = vmatprep.mubr.f32.mxu0 0.0
        %912 = vmatmul.mubr.f32.gmra.mrb[0].mxu0 %v774
        %v913 = vpop.f32.mrb[0].mxu0
        %v914 = vadd.f32 %v721, %v913
        %v915 = vpop.f32.mrb[0].mxu0
        %916 = vmatprep.mubr.f32.mxu0 0.0
        %917 = vmatmul.mubr.f32.gmra.mrb[0].mxu0 %v777
        %v918 = vpop.f32.mrb[0].mxu0
        %v919 = vadd.f32 %v726, %v918
        %v920 = vpop.f32.mrb[0].mxu0
        %921 = vmatprep.mubr.f32.mxu0 0.0
        %922 = vmatmul.mubr.f32.gmra.mrb[0].mxu0 %v780
        %v923 = vpop.f32.mrb[0].mxu0
        %v924 = vadd.f32 %v731, %v923
        %v925 = vpop.f32.mrb[0].mxu0
        %926 = vdwg.mxu0
        %v927 = vmax.f32 %v849, 0.0
        %v928 = vmax.f32 %v854, 0.0
        %v929 = vmax.f32 %v859, 0.0
        %v930 = vmax.f32 %v864, 0.0
        %v931 = vmax.f32 %v869, 0.0
        %v932 = vmax.f32 %v874, 0.0
        %v933 = vmax.f32 %v879, 0.0
        %v934 = vmax.f32 %v884, 0.0
        %v935 = vmax.f32 %v889, 0.0
        %v936 = vmax.f32 %v894, 0.0
        %v937 = vmax.f32 %v899, 0.0
        %v938 = vmax.f32 %v904, 0.0
        %v939 = vmax.f32 %v909, 0.0
        %v940 = vmax.f32 %v914, 0.0
        %v941 = vmax.f32 %v919, 0.0
        %v942 = vmax.f32 %v924, 0.0
        %v943 = vld [vmem:[#allocation2] sm:$0xff]
        %v944 = vld [vmem:[#allocation2 + $0x8] sm:$0xff]
        %v945 = vld [vmem:[#allocation2 + $0x10] sm:$0xff]
        %v946 = vld [vmem:[#allocation2 + $0x18] sm:$0xff]
        %v947 = vld [vmem:[#allocation2 + $0x20] sm:$0xff]
        %v948 = vld [vmem:[#allocation2 + $0x28] sm:$0xff]
        %v949 = vld [vmem:[#allocation2 + $0x30] sm:$0xff]
        %v950 = vld [vmem:[#allocation2 + $0x38] sm:$0xff]
        %v951 = vld [vmem:[#allocation2 + $0x40] sm:$0xff]
        %v952 = vld [vmem:[#allocation2 + $0x48] sm:$0xff]
        %v953 = vld [vmem:[#allocation2 + $0x50] sm:$0xff]
        %v954 = vld [vmem:[#allocation2 + $0x58] sm:$0xff]
        %v955 = vld [vmem:[#allocation2 + $0x60] sm:$0xff]
        %v956 = vld [vmem:[#allocation2 + $0x68] sm:$0xff]
        %v957 = vld [vmem:[#allocation2 + $0x70] sm:$0xff]
        %v958 = vld [vmem:[#allocation2 + $0x78] sm:$0xff]
        %v959 = vld [vmem:[#allocation2 + $0x80] sm:$0xff]
        %v960 = vld [vmem:[#allocation2 + $0x88] sm:$0xff]
        %v961 = vld [vmem:[#allocation2 + $0x90] sm:$0xff]
        %v962 = vld [vmem:[#allocation2 + $0x98] sm:$0xff]
        %v963 = vld [vmem:[#allocation2 + $0xa0] sm:$0xff]
        %v964 = vld [vmem:[#allocation2 + $0xa8] sm:$0xff]
        %v965 = vld [vmem:[#allocation2 + $0xb0] sm:$0xff]
        %v966 = vld [vmem:[#allocation2 + $0xb8] sm:$0xff]
        %v967 = vld [vmem:[#allocation2 + $0xc0] sm:$0xff]
        %v968 = vld [vmem:[#allocation2 + $0xc8] sm:$0xff]
        %v969 = vld [vmem:[#allocation2 + $0xd0] sm:$0xff]
        %v970 = vld [vmem:[#allocation2 + $0xd8] sm:$0xff]
        %v971 = vld [vmem:[#allocation2 + $0xe0] sm:$0xff]
        %v972 = vld [vmem:[#allocation2 + $0xe8] sm:$0xff]
        %v973 = vld [vmem:[#allocation2 + $0xf0] sm:$0xff]
        %v974 = vld [vmem:[#allocation2 + $0xf8] sm:$0xff]
        %v975 = vld [vmem:[%s6] sm:$0xff]
        %v976 = vld [vmem:[%s6 + $0x8] sm:$0xff]
        %v977 = vld [vmem:[%s6 + $0x10] sm:$0xff]
        %v978 = vld [vmem:[%s6 + $0x18] sm:$0xff]
        %v979 = vld [vmem:[%s6 + $0x20] sm:$0xff]
        %v980 = vld [vmem:[%s6 + $0x28] sm:$0xff]
        %v981 = vld [vmem:[%s6 + $0x30] sm:$0xff]
        %v982 = vld [vmem:[%s6 + $0x38] sm:$0xff]
        %v983 = vld [vmem:[%s6 + $0x40] sm:$0xff]
        %v984 = vld [vmem:[%s6 + $0x48] sm:$0xff]
        %v985 = vld [vmem:[%s6 + $0x50] sm:$0xff]
        %v986 = vld [vmem:[%s6 + $0x58] sm:$0xff]
        %v987 = vld [vmem:[%s6 + $0x60] sm:$0xff]
        %v988 = vld [vmem:[%s6 + $0x68] sm:$0xff]
        %v989 = vld [vmem:[%s6 + $0x70] sm:$0xff]
        %v990 = vld [vmem:[%s6 + $0x78] sm:$0xff]
        %v991 = vld [vmem:[%s6 + $0x80] sm:$0xff]
        %v992 = vld [vmem:[%s6 + $0x88] sm:$0xff]
        %v993 = vld [vmem:[%s6 + $0x90] sm:$0xff]
        %v994 = vld [vmem:[%s6 + $0x98] sm:$0xff]
        %v995 = vld [vmem:[%s6 + $0xa0] sm:$0xff]
        %v996 = vld [vmem:[%s6 + $0xa8] sm:$0xff]
        %v997 = vld [vmem:[%s6 + $0xb0] sm:$0xff]
        %v998 = vld [vmem:[%s6 + $0xb8] sm:$0xff]
        %v999 = vld [vmem:[%s6 + $0xc0] sm:$0xff]
        %v1000 = vld [vmem:[%s6 + $0xc8] sm:$0xff]
        %v1001 = vld [vmem:[%s6 + $0xd0] sm:$0xff]
        %v1002 = vld [vmem:[%s6 + $0xd8] sm:$0xff]
        %v1003 = vld [vmem:[%s6 + $0xe0] sm:$0xff]
        %v1004 = vld [vmem:[%s6 + $0xe8] sm:$0xff]
        %v1005 = vld [vmem:[%s6 + $0xf0] sm:$0xff]
        %v1006 = vld [vmem:[%s6 + $0xf8] sm:$0xff]
        %1008 = vset.pattern.permute.xlu0 0
        %1009 = vperm.xlu0 %1008, %v975
        %v1010 = vpop.permute.xlu0 %1009
        %1013 = vset.pattern.permute.xlu0 0
        %1014 = vperm.xlu0 %1013, %v976
        %v1015 = vpop.permute.xlu0 %1014
        %1018 = vset.pattern.permute.xlu0 0
        %1019 = vperm.xlu0 %1018, %v977
        %v1020 = vpop.permute.xlu0 %1019
        %1023 = vset.pattern.permute.xlu0 0
        %1024 = vperm.xlu0 %1023, %v978
        %v1025 = vpop.permute.xlu0 %1024
        %1028 = vset.pattern.permute.xlu0 0
        %1029 = vperm.xlu0 %1028, %v979
        %v1030 = vpop.permute.xlu0 %1029
        %1033 = vset.pattern.permute.xlu0 0
        %1034 = vperm.xlu0 %1033, %v980
        %v1035 = vpop.permute.xlu0 %1034
        %1038 = vset.pattern.permute.xlu0 0
        %1039 = vperm.xlu0 %1038, %v981
        %v1040 = vpop.permute.xlu0 %1039
        %1043 = vset.pattern.permute.xlu0 0
        %1044 = vperm.xlu0 %1043, %v982
        %v1045 = vpop.permute.xlu0 %1044
        %1048 = vset.pattern.permute.xlu0 0
        %1049 = vperm.xlu0 %1048, %v983
        %v1050 = vpop.permute.xlu0 %1049
        %1053 = vset.pattern.permute.xlu0 0
        %1054 = vperm.xlu0 %1053, %v984
        %v1055 = vpop.permute.xlu0 %1054
        %1058 = vset.pattern.permute.xlu0 0
        %1059 = vperm.xlu0 %1058, %v985
        %v1060 = vpop.permute.xlu0 %1059
        %1063 = vset.pattern.permute.xlu0 0
        %1064 = vperm.xlu0 %1063, %v986
        %v1065 = vpop.permute.xlu0 %1064
        %1068 = vset.pattern.permute.xlu0 0
        %1069 = vperm.xlu0 %1068, %v987
        %v1070 = vpop.permute.xlu0 %1069
        %1073 = vset.pattern.permute.xlu0 0
        %1074 = vperm.xlu0 %1073, %v988
        %v1075 = vpop.permute.xlu0 %1074
        %1078 = vset.pattern.permute.xlu0 0
        %1079 = vperm.xlu0 %1078, %v989
        %v1080 = vpop.permute.xlu0 %1079
        %1083 = vset.pattern.permute.xlu0 0
        %1084 = vperm.xlu0 %1083, %v990
        %v1085 = vpop.permute.xlu0 %1084
        %1088 = vset.pattern.permute.xlu0 0
        %1089 = vperm.xlu0 %1088, %v991
        %v1090 = vpop.permute.xlu0 %1089
        %1093 = vset.pattern.permute.xlu0 0
        %1094 = vperm.xlu0 %1093, %v992
        %v1095 = vpop.permute.xlu0 %1094
        %1098 = vset.pattern.permute.xlu0 0
        %1099 = vperm.xlu0 %1098, %v993
        %v1100 = vpop.permute.xlu0 %1099
        %1103 = vset.pattern.permute.xlu0 0
        %1104 = vperm.xlu0 %1103, %v994
        %v1105 = vpop.permute.xlu0 %1104
        %1108 = vset.pattern.permute.xlu0 0
        %1109 = vperm.xlu0 %1108, %v995
        %v1110 = vpop.permute.xlu0 %1109
        %1113 = vset.pattern.permute.xlu0 0
        %1114 = vperm.xlu0 %1113, %v996
        %v1115 = vpop.permute.xlu0 %1114
        %1118 = vset.pattern.permute.xlu0 0
        %1119 = vperm.xlu0 %1118, %v997
        %v1120 = vpop.permute.xlu0 %1119
        %1123 = vset.pattern.permute.xlu0 0
        %1124 = vperm.xlu0 %1123, %v998
        %v1125 = vpop.permute.xlu0 %1124
        %1128 = vset.pattern.permute.xlu0 0
        %1129 = vperm.xlu0 %1128, %v999
        %v1130 = vpop.permute.xlu0 %1129
        %1133 = vset.pattern.permute.xlu0 0
        %1134 = vperm.xlu0 %1133, %v1000
        %v1135 = vpop.permute.xlu0 %1134
        %1138 = vset.pattern.permute.xlu0 0
        %1139 = vperm.xlu0 %1138, %v1001
        %v1140 = vpop.permute.xlu0 %1139
        %1143 = vset.pattern.permute.xlu0 0
        %1144 = vperm.xlu0 %1143, %v1002
        %v1145 = vpop.permute.xlu0 %1144
        %1148 = vset.pattern.permute.xlu0 0
        %1149 = vperm.xlu0 %1148, %v1003
        %v1150 = vpop.permute.xlu0 %1149
        %1153 = vset.pattern.permute.xlu0 0
        %1154 = vperm.xlu0 %1153, %v1004
        %v1155 = vpop.permute.xlu0 %1154
        %1158 = vset.pattern.permute.xlu0 0
        %1159 = vperm.xlu0 %1158, %v1005
        %v1160 = vpop.permute.xlu0 %1159
        %1163 = vset.pattern.permute.xlu0 0
        %1164 = vperm.xlu0 %1163, %v1006
        %v1165 = vpop.permute.xlu0 %1164
        %1167 = vmatprep.subr.mxu0 0.0
        %1168 = vmatpush1.msra.mxu0 %v927
        %1169 = vmatprep.subr.mxu0 0.0
        %1170 = vmatpush1.msra.mxu0 %v928
        %1171 = vmatprep.subr.mxu0 0.0
        %1172 = vmatpush1.msra.mxu0 %v929
        %1173 = vmatprep.subr.mxu0 0.0
        %1174 = vmatpush1.msra.mxu0 %v930
        %1175 = vmatprep.subr.mxu0 0.0
        %1176 = vmatpush1.msra.mxu0 %v931
        %1177 = vmatprep.subr.mxu0 0.0
        %1178 = vmatpush1.msra.mxu0 %v932
        %1179 = vmatprep.subr.mxu0 0.0
        %1180 = vmatpush1.msra.mxu0 %v933
        %1181 = vmatprep.subr.mxu0 0.0
        %1182 = vmatpush1.msra.mxu0 %v934
        %1183 = vmatprep.subr.mxu0 0.0
        %1184 = vmatpush1.msra.mxu0 %v935
        %1185 = vmatprep.subr.mxu0 0.0
        %1186 = vmatpush1.msra.mxu0 %v936
        %1187 = vmatprep.subr.mxu0 0.0
        %1188 = vmatpush1.msra.mxu0 %v937
        %1189 = vmatprep.subr.mxu0 0.0
        %1190 = vmatpush1.msra.mxu0 %v938
        %1191 = vmatprep.subr.mxu0 0.0
        %1192 = vmatpush1.msra.mxu0 %v939
        %1193 = vmatprep.subr.mxu0 0.0
        %1194 = vmatpush1.msra.mxu0 %v940
        %1195 = vmatprep.subr.mxu0 0.0
        %1196 = vmatpush1.msra.mxu0 %v941
        %1197 = vmatprep.subr.mxu0 0.0
        %1198 = vmatpush1.msra.mxu0 %v942
        %1199 = vmatprep.subr.mxu0 0.0
        %1200 = vmatpush1.msra.mxu0 0.0
        %1201 = vmatprep.subr.mxu0 0.0
        %1202 = vmatpush1.msra.mxu0 0.0
        %1203 = vmatprep.subr.mxu0 0.0
        %1204 = vmatpush1.msra.mxu0 0.0
        %1205 = vmatprep.subr.mxu0 0.0
        %1206 = vmatpush1.msra.mxu0 0.0
        %1207 = vmatprep.subr.mxu0 0.0
        %1208 = vmatpush1.msra.mxu0 0.0
        %1209 = vmatprep.subr.mxu0 0.0
        %1210 = vmatpush1.msra.mxu0 0.0
        %1211 = vmatprep.subr.mxu0 0.0
        %1212 = vmatpush1.msra.mxu0 0.0
        %1213 = vmatprep.subr.mxu0 0.0
        %1214 = vmatpush1.msra.mxu0 0.0
        %1215 = vmatprep.subr.mxu0 0.0
        %1216 = vmatpush1.msra.mxu0 0.0
        %1217 = vmatprep.subr.mxu0 0.0
        %1218 = vmatpush1.msra.mxu0 0.0
        %1219 = vmatprep.subr.mxu0 0.0
        %1220 = vmatpush1.msra.mxu0 0.0
        %1221 = vmatprep.subr.mxu0 0.0
        %1222 = vmatpush1.msra.mxu0 0.0
        %1223 = vmatprep.subr.mxu0 0.0
        %1224 = vmatpush1.msra.mxu0 0.0
        %1225 = vmatprep.subr.mxu0 0.0
        %1226 = vmatpush1.msra.mxu0 0.0
        %1227 = vmatprep.subr.mxu0 0.0
        %1228 = vmatpush1.msra.mxu0 0.0
        %1229 = vmatprep.subr.mxu0 0.0
        %1230 = vmatpush1.msra.mxu0 0.0
        %1231 = vmatprep.mubr.f32.mxu0 0.0
        %1232 = vmatmul.mubr.f32.gmra.mrb[0].mxu0 %v943
        %v1233 = vpop.f32.mrb[0].mxu0
        %v1234 = vadd.f32 %v1010, %v1233
        %v1235 = vpop.f32.mrb[0].mxu0
        %1236 = vmatprep.mubr.f32.mxu0 0.0
        %1237 = vmatmul.mubr.f32.gmra.mrb[0].mxu0 %v944
        %v1238 = vpop.f32.mrb[0].mxu0
        %v1239 = vadd.f32 %v1015, %v1238
        %v1240 = vpop.f32.mrb[0].mxu0
        %1241 = vmatprep.mubr.f32.mxu0 0.0
        %1242 = vmatmul.mubr.f32.gmra.mrb[0].mxu0 %v945
        %v1243 = vpop.f32.mrb[0].mxu0
        %v1244 = vadd.f32 %v1020, %v1243
        %v1245 = vpop.f32.mrb[0].mxu0
        %1246 = vmatprep.mubr.f32.mxu0 0.0
        %1247 = vmatmul.mubr.f32.gmra.mrb[0].mxu0 %v946
        %v1248 = vpop.f32.mrb[0].mxu0
        %v1249 = vadd.f32 %v1025, %v1248
        %v1250 = vpop.f32.mrb[0].mxu0
        %1251 = vmatprep.mubr.f32.mxu0 0.0
        %1252 = vmatmul.mubr.f32.gmra.mrb[0].mxu0 %v947
        %v1253 = vpop.f32.mrb[0].mxu0
        %v1254 = vadd.f32 %v1030, %v1253
        %v1255 = vpop.f32.mrb[0].mxu0
        %1256 = vmatprep.mubr.f32.mxu0 0.0
        %1257 = vmatmul.mubr.f32.gmra.mrb[0].mxu0 %v948
        %v1258 = vpop.f32.mrb[0].mxu0
        %v1259 = vadd.f32 %v1035, %v1258
        %v1260 = vpop.f32.mrb[0].mxu0
        %1261 = vmatprep.mubr.f32.mxu0 0.0
        %1262 = vmatmul.mubr.f32.gmra.mrb[0].mxu0 %v949
        %v1263 = vpop.f32.mrb[0].mxu0
        %v1264 = vadd.f32 %v1040, %v1263
        %v1265 = vpop.f32.mrb[0].mxu0
        %1266 = vmatprep.mubr.f32.mxu0 0.0
        %1267 = vmatmul.mubr.f32.gmra.mrb[0].mxu0 %v950
        %v1268 = vpop.f32.mrb[0].mxu0
        %v1269 = vadd.f32 %v1045, %v1268
        %v1270 = vpop.f32.mrb[0].mxu0
        %1271 = vmatprep.mubr.f32.mxu0 0.0
        %1272 = vmatmul.mubr.f32.gmra.mrb[0].mxu0 %v951
        %v1273 = vpop.f32.mrb[0].mxu0
        %v1274 = vadd.f32 %v1050, %v1273
        %v1275 = vpop.f32.mrb[0].mxu0
        %1276 = vmatprep.mubr.f32.mxu0 0.0
        %1277 = vmatmul.mubr.f32.gmra.mrb[0].mxu0 %v952
        %v1278 = vpop.f32.mrb[0].mxu0
        %v1279 = vadd.f32 %v1055, %v1278
        %v1280 = vpop.f32.mrb[0].mxu0
        %1281 = vmatprep.mubr.f32.mxu0 0.0
        %1282 = vmatmul.mubr.f32.gmra.mrb[0].mxu0 %v953
        %v1283 = vpop.f32.mrb[0].mxu0
        %v1284 = vadd.f32 %v1060, %v1283
        %v1285 = vpop.f32.mrb[0].mxu0
        %1286 = vmatprep.mubr.f32.mxu0 0.0
        %1287 = vmatmul.mubr.f32.gmra.mrb[0].mxu0 %v954
        %v1288 = vpop.f32.mrb[0].mxu0
        %v1289 = vadd.f32 %v1065, %v1288
        %v1290 = vpop.f32.mrb[0].mxu0
        %1291 = vmatprep.mubr.f32.mxu0 0.0
        %1292 = vmatmul.mubr.f32.gmra.mrb[0].mxu0 %v955
        %v1293 = vpop.f32.mrb[0].mxu0
        %v1294 = vadd.f32 %v1070, %v1293
        %v1295 = vpop.f32.mrb[0].mxu0
        %1296 = vmatprep.mubr.f32.mxu0 0.0
        %1297 = vmatmul.mubr.f32.gmra.mrb[0].mxu0 %v956
        %v1298 = vpop.f32.mrb[0].mxu0
        %v1299 = vadd.f32 %v1075, %v1298
        %v1300 = vpop.f32.mrb[0].mxu0
        %1301 = vmatprep.mubr.f32.mxu0 0.0
        %1302 = vmatmul.mubr.f32.gmra.mrb[0].mxu0 %v957
        %v1303 = vpop.f32.mrb[0].mxu0
        %v1304 = vadd.f32 %v1080, %v1303
        %v1305 = vpop.f32.mrb[0].mxu0
        %1306 = vmatprep.mubr.f32.mxu0 0.0
        %1307 = vmatmul.mubr.f32.gmra.mrb[0].mxu0 %v958
        %v1308 = vpop.f32.mrb[0].mxu0
        %v1309 = vadd.f32 %v1085, %v1308
        %v1310 = vpop.f32.mrb[0].mxu0
        %1311 = vmatprep.mubr.f32.mxu0 0.0
        %1312 = vmatmul.mubr.f32.gmra.mrb[0].mxu0 %v959
        %v1313 = vpop.f32.mrb[0].mxu0
        %v1314 = vadd.f32 %v1090, %v1313
        %v1315 = vpop.f32.mrb[0].mxu0
        %1316 = vmatprep.mubr.f32.mxu0 0.0
        %1317 = vmatmul.mubr.f32.gmra.mrb[0].mxu0 %v960
        %v1318 = vpop.f32.mrb[0].mxu0
        %v1319 = vadd.f32 %v1095, %v1318
        %v1320 = vpop.f32.mrb[0].mxu0
        %1321 = vmatprep.mubr.f32.mxu0 0.0
        %1322 = vmatmul.mubr.f32.gmra.mrb[0].mxu0 %v961
        %v1323 = vpop.f32.mrb[0].mxu0
        %v1324 = vadd.f32 %v1100, %v1323
        %v1325 = vpop.f32.mrb[0].mxu0
        %1326 = vmatprep.mubr.f32.mxu0 0.0
        %1327 = vmatmul.mubr.f32.gmra.mrb[0].mxu0 %v962
        %v1328 = vpop.f32.mrb[0].mxu0
        %v1329 = vadd.f32 %v1105, %v1328
        %v1330 = vpop.f32.mrb[0].mxu0
        %1331 = vmatprep.mubr.f32.mxu0 0.0
        %1332 = vmatmul.mubr.f32.gmra.mrb[0].mxu0 %v963
        %v1333 = vpop.f32.mrb[0].mxu0
        %v1334 = vadd.f32 %v1110, %v1333
        %v1335 = vpop.f32.mrb[0].mxu0
        %1336 = vmatprep.mubr.f32.mxu0 0.0
        %1337 = vmatmul.mubr.f32.gmra.mrb[0].mxu0 %v964
        %v1338 = vpop.f32.mrb[0].mxu0
        %v1339 = vadd.f32 %v1115, %v1338
        %v1340 = vpop.f32.mrb[0].mxu0
        %1341 = vmatprep.mubr.f32.mxu0 0.0
        %1342 = vmatmul.mubr.f32.gmra.mrb[0].mxu0 %v965
        %v1343 = vpop.f32.mrb[0].mxu0
        %v1344 = vadd.f32 %v1120, %v1343
        %v1345 = vpop.f32.mrb[0].mxu0
        %1346 = vmatprep.mubr.f32.mxu0 0.0
        %1347 = vmatmul.mubr.f32.gmra.mrb[0].mxu0 %v966
        %v1348 = vpop.f32.mrb[0].mxu0
        %v1349 = vadd.f32 %v1125, %v1348
        %v1350 = vpop.f32.mrb[0].mxu0
        %1351 = vmatprep.mubr.f32.mxu0 0.0
        %1352 = vmatmul.mubr.f32.gmra.mrb[0].mxu0 %v967
        %v1353 = vpop.f32.mrb[0].mxu0
        %v1354 = vadd.f32 %v1130, %v1353
        %v1355 = vpop.f32.mrb[0].mxu0
        %1356 = vmatprep.mubr.f32.mxu0 0.0
        %1357 = vmatmul.mubr.f32.gmra.mrb[0].mxu0 %v968
        %v1358 = vpop.f32.mrb[0].mxu0
        %v1359 = vadd.f32 %v1135, %v1358
        %v1360 = vpop.f32.mrb[0].mxu0
        %1361 = vmatprep.mubr.f32.mxu0 0.0
        %1362 = vmatmul.mubr.f32.gmra.mrb[0].mxu0 %v969
        %v1363 = vpop.f32.mrb[0].mxu0
        %v1364 = vadd.f32 %v1140, %v1363
        %v1365 = vpop.f32.mrb[0].mxu0
        %1366 = vmatprep.mubr.f32.mxu0 0.0
        %1367 = vmatmul.mubr.f32.gmra.mrb[0].mxu0 %v970
        %v1368 = vpop.f32.mrb[0].mxu0
        %v1369 = vadd.f32 %v1145, %v1368
        %v1370 = vpop.f32.mrb[0].mxu0
        %1371 = vmatprep.mubr.f32.mxu0 0.0
        %1372 = vmatmul.mubr.f32.gmra.mrb[0].mxu0 %v971
        %v1373 = vpop.f32.mrb[0].mxu0
        %v1374 = vadd.f32 %v1150, %v1373
        %v1375 = vpop.f32.mrb[0].mxu0
        %1376 = vmatprep.mubr.f32.mxu0 0.0
        %1377 = vmatmul.mubr.f32.gmra.mrb[0].mxu0 %v972
        %v1378 = vpop.f32.mrb[0].mxu0
        %v1379 = vadd.f32 %v1155, %v1378
        %v1380 = vpop.f32.mrb[0].mxu0
        %1381 = vmatprep.mubr.f32.mxu0 0.0
        %1382 = vmatmul.mubr.f32.gmra.mrb[0].mxu0 %v973
        %v1383 = vpop.f32.mrb[0].mxu0
        %v1384 = vadd.f32 %v1160, %v1383
        %v1385 = vpop.f32.mrb[0].mxu0
        %1386 = vmatprep.mubr.f32.mxu0 0.0
        %1387 = vmatmul.mubr.f32.gmra.mrb[0].mxu0 %v974
        %v1388 = vpop.f32.mrb[0].mxu0
        %v1389 = vadd.f32 %v1165, %v1388
        %v1390 = vpop.f32.mrb[0].mxu0
        %1391 = vdwg.mxu0
        %v1392 = vmax.f32 %v1234, 0.0
        %v1393 = vmax.f32 %v1239, 0.0
        %v1394 = vmax.f32 %v1244, 0.0
        %v1395 = vmax.f32 %v1249, 0.0
        %v1396 = vmax.f32 %v1254, 0.0
        %v1397 = vmax.f32 %v1259, 0.0
        %v1398 = vmax.f32 %v1264, 0.0
        %v1399 = vmax.f32 %v1269, 0.0
        %v1400 = vmax.f32 %v1274, 0.0
        %v1401 = vmax.f32 %v1279, 0.0
        %v1402 = vmax.f32 %v1284, 0.0
        %v1403 = vmax.f32 %v1289, 0.0
        %v1404 = vmax.f32 %v1294, 0.0
        %v1405 = vmax.f32 %v1299, 0.0
        %v1406 = vmax.f32 %v1304, 0.0
        %v1407 = vmax.f32 %v1309, 0.0
        %v1408 = vmax.f32 %v1314, 0.0
        %v1409 = vmax.f32 %v1319, 0.0
        %v1410 = vmax.f32 %v1324, 0.0
        %v1411 = vmax.f32 %v1329, 0.0
        %v1412 = vmax.f32 %v1334, 0.0
        %v1413 = vmax.f32 %v1339, 0.0
        %v1414 = vmax.f32 %v1344, 0.0
        %v1415 = vmax.f32 %v1349, 0.0
        %v1416 = vmax.f32 %v1354, 0.0
        %v1417 = vmax.f32 %v1359, 0.0
        %v1418 = vmax.f32 %v1364, 0.0
        %v1419 = vmax.f32 %v1369, 0.0
        %v1420 = vmax.f32 %v1374, 0.0
        %v1421 = vmax.f32 %v1379, 0.0
        %v1422 = vmax.f32 %v1384, 0.0
        %v1423 = vmax.f32 %v1389, 0.0
        %v1424 = vld [vmem:[%s7] sm:$0xff]
        %v1425 = vld [vmem:[%s7 + $0x8] sm:$0xff]
        %v1426 = vld [vmem:[%s7 + $0x10] sm:$0xff]
        %v1427 = vld [vmem:[%s7 + $0x18] sm:$0xff]
        %v1428 = vld [vmem:[%s7 + $0x20] sm:$0xff]
        %v1429 = vld [vmem:[%s7 + $0x28] sm:$0xff]
        %v1430 = vld [vmem:[%s7 + $0x30] sm:$0xff]
        %v1431 = vld [vmem:[%s7 + $0x38] sm:$0xff]
        %v1432 = vld [vmem:[%s7 + $0x40] sm:$0xff]
        %v1433 = vld [vmem:[%s7 + $0x48] sm:$0xff]
        %v1434 = vld [vmem:[%s7 + $0x50] sm:$0xff]
        %v1435 = vld [vmem:[%s7 + $0x58] sm:$0xff]
        %v1436 = vld [vmem:[%s7 + $0x60] sm:$0xff]
        %v1437 = vld [vmem:[%s7 + $0x68] sm:$0xff]
        %v1438 = vld [vmem:[%s7 + $0x70] sm:$0xff]
        %v1439 = vld [vmem:[%s7 + $0x78] sm:$0xff]
        %v1440 = vld [vmem:[%s7 + $0x80] sm:$0xff]
        %v1441 = vld [vmem:[%s7 + $0x88] sm:$0xff]
        %v1442 = vld [vmem:[%s7 + $0x90] sm:$0xff]
        %v1443 = vld [vmem:[%s7 + $0x98] sm:$0xff]
        %v1444 = vld [vmem:[%s7 + $0xa0] sm:$0xff]
        %v1445 = vld [vmem:[%s7 + $0xa8] sm:$0xff]
        %v1446 = vld [vmem:[%s7 + $0xb0] sm:$0xff]
        %v1447 = vld [vmem:[%s7 + $0xb8] sm:$0xff]
        %v1448 = vld [vmem:[%s7 + $0xc0] sm:$0xff]
        %v1449 = vld [vmem:[%s7 + $0xc8] sm:$0xff]
        %v1450 = vld [vmem:[%s7 + $0xd0] sm:$0xff]
        %v1451 = vld [vmem:[%s7 + $0xd8] sm:$0xff]
        %v1452 = vld [vmem:[%s7 + $0xe0] sm:$0xff]
        %v1453 = vld [vmem:[%s7 + $0xe8] sm:$0xff]
        %v1454 = vld [vmem:[%s7 + $0xf0] sm:$0xff]
        %v1455 = vld [vmem:[%s7 + $0xf8] sm:$0xff]
        %v1456 = vld [vmem:[%s7 + $0x100] sm:$0xff]
        %v1457 = vld [vmem:[%s7 + $0x108] sm:$0xff]
        %v1458 = vld [vmem:[%s7 + $0x110] sm:$0xff]
        %v1459 = vld [vmem:[%s7 + $0x118] sm:$0xff]
        %v1460 = vld [vmem:[%s7 + $0x120] sm:$0xff]
        %v1461 = vld [vmem:[%s7 + $0x128] sm:$0xff]
        %v1462 = vld [vmem:[%s7 + $0x130] sm:$0xff]
        %v1463 = vld [vmem:[%s7 + $0x138] sm:$0xff]
        %v1464 = vld [vmem:[%s7 + $0x140] sm:$0xff]
        %v1465 = vld [vmem:[%s7 + $0x148] sm:$0xff]
        %v1466 = vld [vmem:[%s7 + $0x150] sm:$0xff]
        %v1467 = vld [vmem:[%s7 + $0x158] sm:$0xff]
        %v1468 = vld [vmem:[%s7 + $0x160] sm:$0xff]
        %v1469 = vld [vmem:[%s7 + $0x168] sm:$0xff]
        %v1470 = vld [vmem:[%s7 + $0x170] sm:$0xff]
        %v1471 = vld [vmem:[%s7 + $0x178] sm:$0xff]
        %v1472 = vld [vmem:[%s7 + $0x180] sm:$0xff]
        %v1473 = vld [vmem:[%s7 + $0x188] sm:$0xff]
        %v1474 = vld [vmem:[%s7 + $0x190] sm:$0xff]
        %v1475 = vld [vmem:[%s7 + $0x198] sm:$0xff]
        %v1476 = vld [vmem:[%s7 + $0x1a0] sm:$0xff]
        %v1477 = vld [vmem:[%s7 + $0x1a8] sm:$0xff]
        %v1478 = vld [vmem:[%s7 + $0x1b0] sm:$0xff]
        %v1479 = vld [vmem:[%s7 + $0x1b8] sm:$0xff]
        %v1480 = vld [vmem:[%s7 + $0x1c0] sm:$0xff]
        %v1481 = vld [vmem:[%s7 + $0x1c8] sm:$0xff]
        %v1482 = vld [vmem:[%s7 + $0x1d0] sm:$0xff]
        %v1483 = vld [vmem:[%s7 + $0x1d8] sm:$0xff]
        %v1484 = vld [vmem:[%s7 + $0x1e0] sm:$0xff]
        %v1485 = vld [vmem:[%s7 + $0x1e8] sm:$0xff]
        %v1486 = vld [vmem:[%s7 + $0x1f0] sm:$0xff]
        %v1487 = vld [vmem:[%s7 + $0x1f8] sm:$0xff]
        %v1488 = vld [vmem:[%s7 + $0x200] sm:$0xff]
        %v1489 = vld [vmem:[%s7 + $0x208] sm:$0xff]
        %v1490 = vld [vmem:[%s7 + $0x210] sm:$0xff]
        %v1491 = vld [vmem:[%s7 + $0x218] sm:$0xff]
        %v1492 = vld [vmem:[%s7 + $0x220] sm:$0xff]
        %v1493 = vld [vmem:[%s7 + $0x228] sm:$0xff]
        %v1494 = vld [vmem:[%s7 + $0x230] sm:$0xff]
        %v1495 = vld [vmem:[%s7 + $0x238] sm:$0xff]
        %v1496 = vld [vmem:[%s7 + $0x240] sm:$0xff]
        %v1497 = vld [vmem:[%s7 + $0x248] sm:$0xff]
        %v1498 = vld [vmem:[%s7 + $0x250] sm:$0xff]
        %v1499 = vld [vmem:[%s7 + $0x258] sm:$0xff]
        %v1500 = vld [vmem:[%s7 + $0x260] sm:$0xff]
        %v1501 = vld [vmem:[%s7 + $0x268] sm:$0xff]
        %v1502 = vld [vmem:[%s7 + $0x270] sm:$0xff]
        %v1503 = vld [vmem:[%s7 + $0x278] sm:$0xff]
        %v1504 = vld [vmem:[%s7 + $0x280] sm:$0xff]
        %v1505 = vld [vmem:[%s7 + $0x288] sm:$0xff]
        %v1506 = vld [vmem:[%s7 + $0x290] sm:$0xff]
        %v1507 = vld [vmem:[%s7 + $0x298] sm:$0xff]
        %v1508 = vld [vmem:[%s7 + $0x2a0] sm:$0xff]
        %v1509 = vld [vmem:[%s7 + $0x2a8] sm:$0xff]
        %v1510 = vld [vmem:[%s7 + $0x2b0] sm:$0xff]
        %v1511 = vld [vmem:[%s7 + $0x2b8] sm:$0xff]
        %v1512 = vld [vmem:[%s7 + $0x2c0] sm:$0xff]
        %v1513 = vld [vmem:[%s7 + $0x2c8] sm:$0xff]
        %v1514 = vld [vmem:[%s7 + $0x2d0] sm:$0xff]
        %v1515 = vld [vmem:[%s7 + $0x2d8] sm:$0xff]
        %v1516 = vld [vmem:[%s7 + $0x2e0] sm:$0xff]
        %v1517 = vld [vmem:[%s7 + $0x2e8] sm:$0xff]
        %v1518 = vld [vmem:[%s7 + $0x2f0] sm:$0xff]
        %v1519 = vld [vmem:[%s7 + $0x2f8] sm:$0xff]
        %v1520 = vld [vmem:[%s7 + $0x300] sm:$0xff]
        %v1521 = vld [vmem:[%s7 + $0x308] sm:$0xff]
        %v1522 = vld [vmem:[%s7 + $0x310] sm:$0xff]
        %v1523 = vld [vmem:[%s7 + $0x318] sm:$0xff]
        %v1524 = vld [vmem:[%s7 + $0x320] sm:$0xff]
        %v1525 = vld [vmem:[%s7 + $0x328] sm:$0xff]
        %v1526 = vld [vmem:[%s7 + $0x330] sm:$0xff]
        %v1527 = vld [vmem:[%s7 + $0x338] sm:$0xff]
        %v1528 = vld [vmem:[%s7 + $0x340] sm:$0xff]
        %v1529 = vld [vmem:[%s7 + $0x348] sm:$0xff]
        %v1530 = vld [vmem:[%s7 + $0x350] sm:$0xff]
        %v1531 = vld [vmem:[%s7 + $0x358] sm:$0xff]
        %v1532 = vld [vmem:[%s7 + $0x360] sm:$0xff]
        %v1533 = vld [vmem:[%s7 + $0x368] sm:$0xff]
        %v1534 = vld [vmem:[%s7 + $0x370] sm:$0xff]
        %v1535 = vld [vmem:[%s7 + $0x378] sm:$0xff]
        %v1536 = vld [vmem:[%s7 + $0x380] sm:$0xff]
        %v1537 = vld [vmem:[%s7 + $0x388] sm:$0xff]
        %v1538 = vld [vmem:[%s7 + $0x390] sm:$0xff]
        %v1539 = vld [vmem:[%s7 + $0x398] sm:$0xff]
        %v1540 = vld [vmem:[%s7 + $0x3a0] sm:$0xff]
        %v1541 = vld [vmem:[%s7 + $0x3a8] sm:$0xff]
        %v1542 = vld [vmem:[%s7 + $0x3b0] sm:$0xff]
        %v1543 = vld [vmem:[%s7 + $0x3b8] sm:$0xff]
        %v1544 = vld [vmem:[%s7 + $0x3c0] sm:$0xff]
        %v1545 = vld [vmem:[%s7 + $0x3c8] sm:$0xff]
        %v1546 = vld [vmem:[%s7 + $0x3d0] sm:$0xff]
        %v1547 = vld [vmem:[%s7 + $0x3d8] sm:$0xff]
        %v1548 = vld [vmem:[%s7 + $0x3e0] sm:$0xff]
        %v1549 = vld [vmem:[%s7 + $0x3e8] sm:$0xff]
        %v1550 = vld [vmem:[%s7 + $0x3f0] sm:$0xff]
        %v1551 = vld [vmem:[%s7 + $0x3f8] sm:$0xff]
        %v1552 = vld [vmem:[%s8] sm:$0xff]
        %v1553 = vld [vmem:[%s8 + $0x8] sm:$0xff]
        %v1554 = vld [vmem:[%s8 + $0x10] sm:$0xff]
        %v1555 = vld [vmem:[%s8 + $0x18] sm:$0xff]
        %v1556 = vld [vmem:[%s8 + $0x20] sm:$0xff]
        %v1557 = vld [vmem:[%s8 + $0x28] sm:$0xff]
        %v1558 = vld [vmem:[%s8 + $0x30] sm:$0xff]
        %v1559 = vld [vmem:[%s8 + $0x38] sm:$0xff]
        %v1560 = vld [vmem:[%s8 + $0x40] sm:$0xff]
        %v1561 = vld [vmem:[%s8 + $0x48] sm:$0xff]
        %v1562 = vld [vmem:[%s8 + $0x50] sm:$0xff]
        %v1563 = vld [vmem:[%s8 + $0x58] sm:$0xff]
        %v1564 = vld [vmem:[%s8 + $0x60] sm:$0xff]
        %v1565 = vld [vmem:[%s8 + $0x68] sm:$0xff]
        %v1566 = vld [vmem:[%s8 + $0x70] sm:$0xff]
        %v1567 = vld [vmem:[%s8 + $0x78] sm:$0xff]
        %v1568 = vld [vmem:[%s8 + $0x80] sm:$0xff]
        %v1569 = vld [vmem:[%s8 + $0x88] sm:$0xff]
        %v1570 = vld [vmem:[%s8 + $0x90] sm:$0xff]
        %v1571 = vld [vmem:[%s8 + $0x98] sm:$0xff]
        %v1572 = vld [vmem:[%s8 + $0xa0] sm:$0xff]
        %v1573 = vld [vmem:[%s8 + $0xa8] sm:$0xff]
        %v1574 = vld [vmem:[%s8 + $0xb0] sm:$0xff]
        %v1575 = vld [vmem:[%s8 + $0xb8] sm:$0xff]
        %v1576 = vld [vmem:[%s8 + $0xc0] sm:$0xff]
        %v1577 = vld [vmem:[%s8 + $0xc8] sm:$0xff]
        %v1578 = vld [vmem:[%s8 + $0xd0] sm:$0xff]
        %v1579 = vld [vmem:[%s8 + $0xd8] sm:$0xff]
        %v1580 = vld [vmem:[%s8 + $0xe0] sm:$0xff]
        %v1581 = vld [vmem:[%s8 + $0xe8] sm:$0xff]
        %v1582 = vld [vmem:[%s8 + $0xf0] sm:$0xff]
        %v1583 = vld [vmem:[%s8 + $0xf8] sm:$0xff]
        %v1584 = vld [vmem:[%s8 + $0x100] sm:$0xff]
        %v1585 = vld [vmem:[%s8 + $0x108] sm:$0xff]
        %v1586 = vld [vmem:[%s8 + $0x110] sm:$0xff]
        %v1587 = vld [vmem:[%s8 + $0x118] sm:$0xff]
        %v1588 = vld [vmem:[%s8 + $0x120] sm:$0xff]
        %v1589 = vld [vmem:[%s8 + $0x128] sm:$0xff]
        %v1590 = vld [vmem:[%s8 + $0x130] sm:$0xff]
        %v1591 = vld [vmem:[%s8 + $0x138] sm:$0xff]
        %v1592 = vld [vmem:[%s8 + $0x140] sm:$0xff]
        %v1593 = vld [vmem:[%s8 + $0x148] sm:$0xff]
        %v1594 = vld [vmem:[%s8 + $0x150] sm:$0xff]
        %v1595 = vld [vmem:[%s8 + $0x158] sm:$0xff]
        %v1596 = vld [vmem:[%s8 + $0x160] sm:$0xff]
        %v1597 = vld [vmem:[%s8 + $0x168] sm:$0xff]
        %v1598 = vld [vmem:[%s8 + $0x170] sm:$0xff]
        %v1599 = vld [vmem:[%s8 + $0x178] sm:$0xff]
        %v1600 = vld [vmem:[%s8 + $0x180] sm:$0xff]
        %v1601 = vld [vmem:[%s8 + $0x188] sm:$0xff]
        %v1602 = vld [vmem:[%s8 + $0x190] sm:$0xff]
        %v1603 = vld [vmem:[%s8 + $0x198] sm:$0xff]
        %v1604 = vld [vmem:[%s8 + $0x1a0] sm:$0xff]
        %v1605 = vld [vmem:[%s8 + $0x1a8] sm:$0xff]
        %v1606 = vld [vmem:[%s8 + $0x1b0] sm:$0xff]
        %v1607 = vld [vmem:[%s8 + $0x1b8] sm:$0xff]
        %v1608 = vld [vmem:[%s8 + $0x1c0] sm:$0xff]
        %v1609 = vld [vmem:[%s8 + $0x1c8] sm:$0xff]
        %v1610 = vld [vmem:[%s8 + $0x1d0] sm:$0xff]
        %v1611 = vld [vmem:[%s8 + $0x1d8] sm:$0xff]
        %v1612 = vld [vmem:[%s8 + $0x1e0] sm:$0xff]
        %v1613 = vld [vmem:[%s8 + $0x1e8] sm:$0xff]
        %v1614 = vld [vmem:[%s8 + $0x1f0] sm:$0xff]
        %v1615 = vld [vmem:[%s8 + $0x1f8] sm:$0xff]
        %1617 = vset.pattern.permute.xlu0 0
        %1618 = vperm.xlu0 %1617, %v1552
        %v1619 = vpop.permute.xlu0 %1618
        %1622 = vset.pattern.permute.xlu0 0
        %1623 = vperm.xlu0 %1622, %v1553
        %v1624 = vpop.permute.xlu0 %1623
        %1627 = vset.pattern.permute.xlu0 0
        %1628 = vperm.xlu0 %1627, %v1554
        %v1629 = vpop.permute.xlu0 %1628
        %1632 = vset.pattern.permute.xlu0 0
        %1633 = vperm.xlu0 %1632, %v1555
        %v1634 = vpop.permute.xlu0 %1633
        %1637 = vset.pattern.permute.xlu0 0
        %1638 = vperm.xlu0 %1637, %v1556
        %v1639 = vpop.permute.xlu0 %1638
        %1642 = vset.pattern.permute.xlu0 0
        %1643 = vperm.xlu0 %1642, %v1557
        %v1644 = vpop.permute.xlu0 %1643
        %1647 = vset.pattern.permute.xlu0 0
        %1648 = vperm.xlu0 %1647, %v1558
        %v1649 = vpop.permute.xlu0 %1648
        %1652 = vset.pattern.permute.xlu0 0
        %1653 = vperm.xlu0 %1652, %v1559
        %v1654 = vpop.permute.xlu0 %1653
        %1657 = vset.pattern.permute.xlu0 0
        %1658 = vperm.xlu0 %1657, %v1560
        %v1659 = vpop.permute.xlu0 %1658
        %1662 = vset.pattern.permute.xlu0 0
        %1663 = vperm.xlu0 %1662, %v1561
        %v1664 = vpop.permute.xlu0 %1663
        %1667 = vset.pattern.permute.xlu0 0
        %1668 = vperm.xlu0 %1667, %v1562
        %v1669 = vpop.permute.xlu0 %1668
        %1672 = vset.pattern.permute.xlu0 0
        %1673 = vperm.xlu0 %1672, %v1563
        %v1674 = vpop.permute.xlu0 %1673
        %1677 = vset.pattern.permute.xlu0 0
        %1678 = vperm.xlu0 %1677, %v1564
        %v1679 = vpop.permute.xlu0 %1678
        %1682 = vset.pattern.permute.xlu0 0
        %1683 = vperm.xlu0 %1682, %v1565
        %v1684 = vpop.permute.xlu0 %1683
        %1687 = vset.pattern.permute.xlu0 0
        %1688 = vperm.xlu0 %1687, %v1566
        %v1689 = vpop.permute.xlu0 %1688
        %1692 = vset.pattern.permute.xlu0 0
        %1693 = vperm.xlu0 %1692, %v1567
        %v1694 = vpop.permute.xlu0 %1693
        %1697 = vset.pattern.permute.xlu0 0
        %1698 = vperm.xlu0 %1697, %v1568
        %v1699 = vpop.permute.xlu0 %1698
        %1702 = vset.pattern.permute.xlu0 0
        %1703 = vperm.xlu0 %1702, %v1569
        %v1704 = vpop.permute.xlu0 %1703
        %1707 = vset.pattern.permute.xlu0 0
        %1708 = vperm.xlu0 %1707, %v1570
        %v1709 = vpop.permute.xlu0 %1708
        %1712 = vset.pattern.permute.xlu0 0
        %1713 = vperm.xlu0 %1712, %v1571
        %v1714 = vpop.permute.xlu0 %1713
        %1717 = vset.pattern.permute.xlu0 0
        %1718 = vperm.xlu0 %1717, %v1572
        %v1719 = vpop.permute.xlu0 %1718
        %1722 = vset.pattern.permute.xlu0 0
        %1723 = vperm.xlu0 %1722, %v1573
        %v1724 = vpop.permute.xlu0 %1723
        %1727 = vset.pattern.permute.xlu0 0
        %1728 = vperm.xlu0 %1727, %v1574
        %v1729 = vpop.permute.xlu0 %1728
        %1732 = vset.pattern.permute.xlu0 0
        %1733 = vperm.xlu0 %1732, %v1575
        %v1734 = vpop.permute.xlu0 %1733
        %1737 = vset.pattern.permute.xlu0 0
        %1738 = vperm.xlu0 %1737, %v1576
        %v1739 = vpop.permute.xlu0 %1738
        %1742 = vset.pattern.permute.xlu0 0
        %1743 = vperm.xlu0 %1742, %v1577
        %v1744 = vpop.permute.xlu0 %1743
        %1747 = vset.pattern.permute.xlu0 0
        %1748 = vperm.xlu0 %1747, %v1578
        %v1749 = vpop.permute.xlu0 %1748
        %1752 = vset.pattern.permute.xlu0 0
        %1753 = vperm.xlu0 %1752, %v1579
        %v1754 = vpop.permute.xlu0 %1753
        %1757 = vset.pattern.permute.xlu0 0
        %1758 = vperm.xlu0 %1757, %v1580
        %v1759 = vpop.permute.xlu0 %1758
        %1762 = vset.pattern.permute.xlu0 0
        %1763 = vperm.xlu0 %1762, %v1581
        %v1764 = vpop.permute.xlu0 %1763
        %1767 = vset.pattern.permute.xlu0 0
        %1768 = vperm.xlu0 %1767, %v1582
        %v1769 = vpop.permute.xlu0 %1768
        %1772 = vset.pattern.permute.xlu0 0
        %1773 = vperm.xlu0 %1772, %v1583
        %v1774 = vpop.permute.xlu0 %1773
        %1777 = vset.pattern.permute.xlu0 0
        %1778 = vperm.xlu0 %1777, %v1584
        %v1779 = vpop.permute.xlu0 %1778
        %1782 = vset.pattern.permute.xlu0 0
        %1783 = vperm.xlu0 %1782, %v1585
        %v1784 = vpop.permute.xlu0 %1783
        %1787 = vset.pattern.permute.xlu0 0
        %1788 = vperm.xlu0 %1787, %v1586
        %v1789 = vpop.permute.xlu0 %1788
        %1792 = vset.pattern.permute.xlu0 0
        %1793 = vperm.xlu0 %1792, %v1587
        %v1794 = vpop.permute.xlu0 %1793
        %1797 = vset.pattern.permute.xlu0 0
        %1798 = vperm.xlu0 %1797, %v1588
        %v1799 = vpop.permute.xlu0 %1798
        %1802 = vset.pattern.permute.xlu0 0
        %1803 = vperm.xlu0 %1802, %v1589
        %v1804 = vpop.permute.xlu0 %1803
        %1807 = vset.pattern.permute.xlu0 0
        %1808 = vperm.xlu0 %1807, %v1590
        %v1809 = vpop.permute.xlu0 %1808
        %1812 = vset.pattern.permute.xlu0 0
        %1813 = vperm.xlu0 %1812, %v1591
        %v1814 = vpop.permute.xlu0 %1813
        %1817 = vset.pattern.permute.xlu0 0
        %1818 = vperm.xlu0 %1817, %v1592
        %v1819 = vpop.permute.xlu0 %1818
        %1822 = vset.pattern.permute.xlu0 0
        %1823 = vperm.xlu0 %1822, %v1593
        %v1824 = vpop.permute.xlu0 %1823
        %1827 = vset.pattern.permute.xlu0 0
        %1828 = vperm.xlu0 %1827, %v1594
        %v1829 = vpop.permute.xlu0 %1828
        %1832 = vset.pattern.permute.xlu0 0
        %1833 = vperm.xlu0 %1832, %v1595
        %v1834 = vpop.permute.xlu0 %1833
        %1837 = vset.pattern.permute.xlu0 0
        %1838 = vperm.xlu0 %1837, %v1596
        %v1839 = vpop.permute.xlu0 %1838
        %1842 = vset.pattern.permute.xlu0 0
        %1843 = vperm.xlu0 %1842, %v1597
        %v1844 = vpop.permute.xlu0 %1843
        %1847 = vset.pattern.permute.xlu0 0
        %1848 = vperm.xlu0 %1847, %v1598
        %v1849 = vpop.permute.xlu0 %1848
        %1852 = vset.pattern.permute.xlu0 0
        %1853 = vperm.xlu0 %1852, %v1599
        %v1854 = vpop.permute.xlu0 %1853
        %1857 = vset.pattern.permute.xlu0 0
        %1858 = vperm.xlu0 %1857, %v1600
        %v1859 = vpop.permute.xlu0 %1858
        %1862 = vset.pattern.permute.xlu0 0
        %1863 = vperm.xlu0 %1862, %v1601
        %v1864 = vpop.permute.xlu0 %1863
        %1867 = vset.pattern.permute.xlu0 0
        %1868 = vperm.xlu0 %1867, %v1602
        %v1869 = vpop.permute.xlu0 %1868
        %1872 = vset.pattern.permute.xlu0 0
        %1873 = vperm.xlu0 %1872, %v1603
        %v1874 = vpop.permute.xlu0 %1873
        %1877 = vset.pattern.permute.xlu0 0
        %1878 = vperm.xlu0 %1877, %v1604
        %v1879 = vpop.permute.xlu0 %1878
        %1882 = vset.pattern.permute.xlu0 0
        %1883 = vperm.xlu0 %1882, %v1605
        %v1884 = vpop.permute.xlu0 %1883
        %1887 = vset.pattern.permute.xlu0 0
        %1888 = vperm.xlu0 %1887, %v1606
        %v1889 = vpop.permute.xlu0 %1888
        %1892 = vset.pattern.permute.xlu0 0
        %1893 = vperm.xlu0 %1892, %v1607
        %v1894 = vpop.permute.xlu0 %1893
        %1897 = vset.pattern.permute.xlu0 0
        %1898 = vperm.xlu0 %1897, %v1608
        %v1899 = vpop.permute.xlu0 %1898
        %1902 = vset.pattern.permute.xlu0 0
        %1903 = vperm.xlu0 %1902, %v1609
        %v1904 = vpop.permute.xlu0 %1903
        %1907 = vset.pattern.permute.xlu0 0
        %1908 = vperm.xlu0 %1907, %v1610
        %v1909 = vpop.permute.xlu0 %1908
        %1912 = vset.pattern.permute.xlu0 0
        %1913 = vperm.xlu0 %1912, %v1611
        %v1914 = vpop.permute.xlu0 %1913
        %1917 = vset.pattern.permute.xlu0 0
        %1918 = vperm.xlu0 %1917, %v1612
        %v1919 = vpop.permute.xlu0 %1918
        %1922 = vset.pattern.permute.xlu0 0
        %1923 = vperm.xlu0 %1922, %v1613
        %v1924 = vpop.permute.xlu0 %1923
        %1927 = vset.pattern.permute.xlu0 0
        %1928 = vperm.xlu0 %1927, %v1614
        %v1929 = vpop.permute.xlu0 %1928
        %1932 = vset.pattern.permute.xlu0 0
        %1933 = vperm.xlu0 %1932, %v1615
        %v1934 = vpop.permute.xlu0 %1933
        %1936 = vmatprep.subr.mxu0 0.0
        %1937 = vmatpush1.msra.mxu0 %v1392
        %1938 = vmatprep.subr.mxu0 0.0
        %1939 = vmatpush1.msra.mxu0 %v1393
        %1940 = vmatprep.subr.mxu0 0.0
        %1941 = vmatpush1.msra.mxu0 %v1394
        %1942 = vmatprep.subr.mxu0 0.0
        %1943 = vmatpush1.msra.mxu0 %v1395
        %1944 = vmatprep.subr.mxu0 0.0
        %1945 = vmatpush1.msra.mxu0 %v1396
        %1946 = vmatprep.subr.mxu0 0.0
        %1947 = vmatpush1.msra.mxu0 %v1397
        %1948 = vmatprep.subr.mxu0 0.0
        %1949 = vmatpush1.msra.mxu0 %v1398
        %1950 = vmatprep.subr.mxu0 0.0
        %1951 = vmatpush1.msra.mxu0 %v1399
        %1952 = vmatprep.subr.mxu0 0.0
        %1953 = vmatpush1.msra.mxu0 %v1400
        %1954 = vmatprep.subr.mxu0 0.0
        %1955 = vmatpush1.msra.mxu0 %v1401
        %1956 = vmatprep.subr.mxu0 0.0
        %1957 = vmatpush1.msra.mxu0 %v1402
        %1958 = vmatprep.subr.mxu0 0.0
        %1959 = vmatpush1.msra.mxu0 %v1403
        %1960 = vmatprep.subr.mxu0 0.0
        %1961 = vmatpush1.msra.mxu0 %v1404
        %1962 = vmatprep.subr.mxu0 0.0
        %1963 = vmatpush1.msra.mxu0 %v1405
        %1964 = vmatprep.subr.mxu0 0.0
        %1965 = vmatpush1.msra.mxu0 %v1406
        %1966 = vmatprep.subr.mxu0 0.0
        %1967 = vmatpush1.msra.mxu0 %v1407
        %1968 = vmatprep.subr.mxu0 0.0
        %1969 = vmatpush1.msra.mxu0 %v1408
        %1970 = vmatprep.subr.mxu0 0.0
        %1971 = vmatpush1.msra.mxu0 %v1409
        %1972 = vmatprep.subr.mxu0 0.0
        %1973 = vmatpush1.msra.mxu0 %v1410
        %1974 = vmatprep.subr.mxu0 0.0
        %1975 = vmatpush1.msra.mxu0 %v1411
        %1976 = vmatprep.subr.mxu0 0.0
        %1977 = vmatpush1.msra.mxu0 %v1412
        %1978 = vmatprep.subr.mxu0 0.0
        %1979 = vmatpush1.msra.mxu0 %v1413
        %1980 = vmatprep.subr.mxu0 0.0
        %1981 = vmatpush1.msra.mxu0 %v1414
        %1982 = vmatprep.subr.mxu0 0.0
        %1983 = vmatpush1.msra.mxu0 %v1415
        %1984 = vmatprep.subr.mxu0 0.0
        %1985 = vmatpush1.msra.mxu0 %v1416
        %1986 = vmatprep.subr.mxu0 0.0
        %1987 = vmatpush1.msra.mxu0 %v1417
        %1988 = vmatprep.subr.mxu0 0.0
        %1989 = vmatpush1.msra.mxu0 %v1418
        %1990 = vmatprep.subr.mxu0 0.0
        %1991 = vmatpush1.msra.mxu0 %v1419
        %1992 = vmatprep.subr.mxu0 0.0
        %1993 = vmatpush1.msra.mxu0 %v1420
        %1994 = vmatprep.subr.mxu0 0.0
        %1995 = vmatpush1.msra.mxu0 %v1421
        %1996 = vmatprep.subr.mxu0 0.0
        %1997 = vmatpush1.msra.mxu0 %v1422
        %1998 = vmatprep.subr.mxu0 0.0
        %1999 = vmatpush1.msra.mxu0 %v1423
        %2000 = vmatprep.mubr.f32.mxu0 %v1425
        %2001 = vmatmul.mubr.f32.gmra.mrb[0].mxu0 %v1424
        %v2002 = vpop.f32.mrb[0].mxu0
        %v2003 = vadd.f32 %v1619, %v2002
        %v2004 = vpop.f32.mrb[0].mxu0
        %2005 = vmatprep.mubr.f32.mxu0 %v1427
        %2006 = vmatmul.mubr.f32.gmra.mrb[0].mxu0 %v1426
        %v2007 = vpop.f32.mrb[0].mxu0
        %v2008 = vadd.f32 %v1624, %v2007
        %v2009 = vpop.f32.mrb[0].mxu0
        %2010 = vmatprep.mubr.f32.mxu0 %v1429
        %2011 = vmatmul.mubr.f32.gmra.mrb[0].mxu0 %v1428
        %v2012 = vpop.f32.mrb[0].mxu0
        %v2013 = vadd.f32 %v1629, %v2012
        %v2014 = vpop.f32.mrb[0].mxu0
        %2015 = vmatprep.mubr.f32.mxu0 %v1431
        %2016 = vmatmul.mubr.f32.gmra.mrb[0].mxu0 %v1430
        %v2017 = vpop.f32.mrb[0].mxu0
        %v2018 = vadd.f32 %v1634, %v2017
        %v2019 = vpop.f32.mrb[0].mxu0
        %2020 = vmatprep.mubr.f32.mxu0 %v1433
        %2021 = vmatmul.mubr.f32.gmra.mrb[0].mxu0 %v1432
        %v2022 = vpop.f32.mrb[0].mxu0
        %v2023 = vadd.f32 %v1639, %v2022
        %v2024 = vpop.f32.mrb[0].mxu0
        %2025 = vmatprep.mubr.f32.mxu0 %v1435
        %2026 = vmatmul.mubr.f32.gmra.mrb[0].mxu0 %v1434
        %v2027 = vpop.f32.mrb[0].mxu0
        %v2028 = vadd.f32 %v1644, %v2027
        %v2029 = vpop.f32.mrb[0].mxu0
        %2030 = vmatprep.mubr.f32.mxu0 %v1437
        %2031 = vmatmul.mubr.f32.gmra.mrb[0].mxu0 %v1436
        %v2032 = vpop.f32.mrb[0].mxu0
        %v2033 = vadd.f32 %v1649, %v2032
        %v2034 = vpop.f32.mrb[0].mxu0
        %2035 = vmatprep.mubr.f32.mxu0 %v1439
        %2036 = vmatmul.mubr.f32.gmra.mrb[0].mxu0 %v1438
        %v2037 = vpop.f32.mrb[0].mxu0
        %v2038 = vadd.f32 %v1654, %v2037
        %v2039 = vpop.f32.mrb[0].mxu0
        %2040 = vmatprep.mubr.f32.mxu0 %v1441
        %2041 = vmatmul.mubr.f32.gmra.mrb[0].mxu0 %v1440
        %v2042 = vpop.f32.mrb[0].mxu0
        %v2043 = vadd.f32 %v1659, %v2042
        %v2044 = vpop.f32.mrb[0].mxu0
        %2045 = vmatprep.mubr.f32.mxu0 %v1443
        %2046 = vmatmul.mubr.f32.gmra.mrb[0].mxu0 %v1442
        %v2047 = vpop.f32.mrb[0].mxu0
        %v2048 = vadd.f32 %v1664, %v2047
        %v2049 = vpop.f32.mrb[0].mxu0
        %2050 = vmatprep.mubr.f32.mxu0 %v1445
        %2051 = vmatmul.mubr.f32.gmra.mrb[0].mxu0 %v1444
        %v2052 = vpop.f32.mrb[0].mxu0
        %v2053 = vadd.f32 %v1669, %v2052
        %v2054 = vpop.f32.mrb[0].mxu0
        %2055 = vmatprep.mubr.f32.mxu0 %v1447
        %2056 = vmatmul.mubr.f32.gmra.mrb[0].mxu0 %v1446
        %v2057 = vpop.f32.mrb[0].mxu0
        %v2058 = vadd.f32 %v1674, %v2057
        %v2059 = vpop.f32.mrb[0].mxu0
        %2060 = vmatprep.mubr.f32.mxu0 %v1449
        %2061 = vmatmul.mubr.f32.gmra.mrb[0].mxu0 %v1448
        %v2062 = vpop.f32.mrb[0].mxu0
        %v2063 = vadd.f32 %v1679, %v2062
        %v2064 = vpop.f32.mrb[0].mxu0
        %2065 = vmatprep.mubr.f32.mxu0 %v1451
        %2066 = vmatmul.mubr.f32.gmra.mrb[0].mxu0 %v1450
        %v2067 = vpop.f32.mrb[0].mxu0
        %v2068 = vadd.f32 %v1684, %v2067
        %v2069 = vpop.f32.mrb[0].mxu0
        %2070 = vmatprep.mubr.f32.mxu0 %v1453
        %2071 = vmatmul.mubr.f32.gmra.mrb[0].mxu0 %v1452
        %v2072 = vpop.f32.mrb[0].mxu0
        %v2073 = vadd.f32 %v1689, %v2072
        %v2074 = vpop.f32.mrb[0].mxu0
        %2075 = vmatprep.mubr.f32.mxu0 %v1455
        %2076 = vmatmul.mubr.f32.gmra.mrb[0].mxu0 %v1454
        %v2077 = vpop.f32.mrb[0].mxu0
        %v2078 = vadd.f32 %v1694, %v2077
        %v2079 = vpop.f32.mrb[0].mxu0
        %2080 = vmatprep.mubr.f32.mxu0 %v1457
        %2081 = vmatmul.mubr.f32.gmra.mrb[0].mxu0 %v1456
        %v2082 = vpop.f32.mrb[0].mxu0
        %v2083 = vadd.f32 %v1699, %v2082
        %v2084 = vpop.f32.mrb[0].mxu0
        %2085 = vmatprep.mubr.f32.mxu0 %v1459
        %2086 = vmatmul.mubr.f32.gmra.mrb[0].mxu0 %v1458
        %v2087 = vpop.f32.mrb[0].mxu0
        %v2088 = vadd.f32 %v1704, %v2087
        %v2089 = vpop.f32.mrb[0].mxu0
        %2090 = vmatprep.mubr.f32.mxu0 %v1461
        %2091 = vmatmul.mubr.f32.gmra.mrb[0].mxu0 %v1460
        %v2092 = vpop.f32.mrb[0].mxu0
        %v2093 = vadd.f32 %v1709, %v2092
        %v2094 = vpop.f32.mrb[0].mxu0
        %2095 = vmatprep.mubr.f32.mxu0 %v1463
        %2096 = vmatmul.mubr.f32.gmra.mrb[0].mxu0 %v1462
        %v2097 = vpop.f32.mrb[0].mxu0
        %v2098 = vadd.f32 %v1714, %v2097
        %v2099 = vpop.f32.mrb[0].mxu0
        %2100 = vmatprep.mubr.f32.mxu0 %v1465
        %2101 = vmatmul.mubr.f32.gmra.mrb[0].mxu0 %v1464
        %v2102 = vpop.f32.mrb[0].mxu0
        %v2103 = vadd.f32 %v1719, %v2102
        %v2104 = vpop.f32.mrb[0].mxu0
        %2105 = vmatprep.mubr.f32.mxu0 %v1467
        %2106 = vmatmul.mubr.f32.gmra.mrb[0].mxu0 %v1466
        %v2107 = vpop.f32.mrb[0].mxu0
        %v2108 = vadd.f32 %v1724, %v2107
        %v2109 = vpop.f32.mrb[0].mxu0
        %2110 = vmatprep.mubr.f32.mxu0 %v1469
        %2111 = vmatmul.mubr.f32.gmra.mrb[0].mxu0 %v1468
        %v2112 = vpop.f32.mrb[0].mxu0
        %v2113 = vadd.f32 %v1729, %v2112
        %v2114 = vpop.f32.mrb[0].mxu0
        %2115 = vmatprep.mubr.f32.mxu0 %v1471
        %2116 = vmatmul.mubr.f32.gmra.mrb[0].mxu0 %v1470
        %v2117 = vpop.f32.mrb[0].mxu0
        %v2118 = vadd.f32 %v1734, %v2117
        %v2119 = vpop.f32.mrb[0].mxu0
        %2120 = vmatprep.mubr.f32.mxu0 %v1473
        %2121 = vmatmul.mubr.f32.gmra.mrb[0].mxu0 %v1472
        %v2122 = vpop.f32.mrb[0].mxu0
        %v2123 = vadd.f32 %v1739, %v2122
        %v2124 = vpop.f32.mrb[0].mxu0
        %2125 = vmatprep.mubr.f32.mxu0 %v1475
        %2126 = vmatmul.mubr.f32.gmra.mrb[0].mxu0 %v1474
        %v2127 = vpop.f32.mrb[0].mxu0
        %v2128 = vadd.f32 %v1744, %v2127
        %v2129 = vpop.f32.mrb[0].mxu0
        %2130 = vmatprep.mubr.f32.mxu0 %v1477
        %2131 = vmatmul.mubr.f32.gmra.mrb[0].mxu0 %v1476
        %v2132 = vpop.f32.mrb[0].mxu0
        %v2133 = vadd.f32 %v1749, %v2132
        %v2134 = vpop.f32.mrb[0].mxu0
        %2135 = vmatprep.mubr.f32.mxu0 %v1479
        %2136 = vmatmul.mubr.f32.gmra.mrb[0].mxu0 %v1478
        %v2137 = vpop.f32.mrb[0].mxu0
        %v2138 = vadd.f32 %v1754, %v2137
        %v2139 = vpop.f32.mrb[0].mxu0
        %2140 = vmatprep.mubr.f32.mxu0 %v1481
        %2141 = vmatmul.mubr.f32.gmra.mrb[0].mxu0 %v1480
        %v2142 = vpop.f32.mrb[0].mxu0
        %v2143 = vadd.f32 %v1759, %v2142
        %v2144 = vpop.f32.mrb[0].mxu0
        %2145 = vmatprep.mubr.f32.mxu0 %v1483
        %2146 = vmatmul.mubr.f32.gmra.mrb[0].mxu0 %v1482
        %v2147 = vpop.f32.mrb[0].mxu0
        %v2148 = vadd.f32 %v1764, %v2147
        %v2149 = vpop.f32.mrb[0].mxu0
        %2150 = vmatprep.mubr.f32.mxu0 %v1485
        %2151 = vmatmul.mubr.f32.gmra.mrb[0].mxu0 %v1484
        %v2152 = vpop.f32.mrb[0].mxu0
        %v2153 = vadd.f32 %v1769, %v2152
        %v2154 = vpop.f32.mrb[0].mxu0
        %2155 = vmatprep.mubr.f32.mxu0 %v1487
        %2156 = vmatmul.mubr.f32.gmra.mrb[0].mxu0 %v1486
        %v2157 = vpop.f32.mrb[0].mxu0
        %v2158 = vadd.f32 %v1774, %v2157
        %v2159 = vpop.f32.mrb[0].mxu0
        %2160 = vmatprep.mubr.f32.mxu0 %v1489
        %2161 = vmatmul.mubr.f32.gmra.mrb[0].mxu0 %v1488
        %v2162 = vpop.f32.mrb[0].mxu0
        %v2163 = vadd.f32 %v1779, %v2162
        %v2164 = vpop.f32.mrb[0].mxu0
        %2165 = vmatprep.mubr.f32.mxu0 %v1491
        %2166 = vmatmul.mubr.f32.gmra.mrb[0].mxu0 %v1490
        %v2167 = vpop.f32.mrb[0].mxu0
        %v2168 = vadd.f32 %v1784, %v2167
        %v2169 = vpop.f32.mrb[0].mxu0
        %2170 = vmatprep.mubr.f32.mxu0 %v1493
        %2171 = vmatmul.mubr.f32.gmra.mrb[0].mxu0 %v1492
        %v2172 = vpop.f32.mrb[0].mxu0
        %v2173 = vadd.f32 %v1789, %v2172
        %v2174 = vpop.f32.mrb[0].mxu0
        %2175 = vmatprep.mubr.f32.mxu0 %v1495
        %2176 = vmatmul.mubr.f32.gmra.mrb[0].mxu0 %v1494
        %v2177 = vpop.f32.mrb[0].mxu0
        %v2178 = vadd.f32 %v1794, %v2177
        %v2179 = vpop.f32.mrb[0].mxu0
        %2180 = vmatprep.mubr.f32.mxu0 %v1497
        %2181 = vmatmul.mubr.f32.gmra.mrb[0].mxu0 %v1496
        %v2182 = vpop.f32.mrb[0].mxu0
        %v2183 = vadd.f32 %v1799, %v2182
        %v2184 = vpop.f32.mrb[0].mxu0
        %2185 = vmatprep.mubr.f32.mxu0 %v1499
        %2186 = vmatmul.mubr.f32.gmra.mrb[0].mxu0 %v1498
        %v2187 = vpop.f32.mrb[0].mxu0
        %v2188 = vadd.f32 %v1804, %v2187
        %v2189 = vpop.f32.mrb[0].mxu0
        %2190 = vmatprep.mubr.f32.mxu0 %v1501
        %2191 = vmatmul.mubr.f32.gmra.mrb[0].mxu0 %v1500
        %v2192 = vpop.f32.mrb[0].mxu0
        %v2193 = vadd.f32 %v1809, %v2192
        %v2194 = vpop.f32.mrb[0].mxu0
        %2195 = vmatprep.mubr.f32.mxu0 %v1503
        %2196 = vmatmul.mubr.f32.gmra.mrb[0].mxu0 %v1502
        %v2197 = vpop.f32.mrb[0].mxu0
        %v2198 = vadd.f32 %v1814, %v2197
        %v2199 = vpop.f32.mrb[0].mxu0
        %2200 = vmatprep.mubr.f32.mxu0 %v1505
        %2201 = vmatmul.mubr.f32.gmra.mrb[0].mxu0 %v1504
        %v2202 = vpop.f32.mrb[0].mxu0
        %v2203 = vadd.f32 %v1819, %v2202
        %v2204 = vpop.f32.mrb[0].mxu0
        %2205 = vmatprep.mubr.f32.mxu0 %v1507
        %2206 = vmatmul.mubr.f32.gmra.mrb[0].mxu0 %v1506
        %v2207 = vpop.f32.mrb[0].mxu0
        %v2208 = vadd.f32 %v1824, %v2207
        %v2209 = vpop.f32.mrb[0].mxu0
        %2210 = vmatprep.mubr.f32.mxu0 %v1509
        %2211 = vmatmul.mubr.f32.gmra.mrb[0].mxu0 %v1508
        %v2212 = vpop.f32.mrb[0].mxu0
        %v2213 = vadd.f32 %v1829, %v2212
        %v2214 = vpop.f32.mrb[0].mxu0
        %2215 = vmatprep.mubr.f32.mxu0 %v1511
        %2216 = vmatmul.mubr.f32.gmra.mrb[0].mxu0 %v1510
        %v2217 = vpop.f32.mrb[0].mxu0
        %v2218 = vadd.f32 %v1834, %v2217
        %v2219 = vpop.f32.mrb[0].mxu0
        %2220 = vmatprep.mubr.f32.mxu0 %v1513
        %2221 = vmatmul.mubr.f32.gmra.mrb[0].mxu0 %v1512
        %v2222 = vpop.f32.mrb[0].mxu0
        %v2223 = vadd.f32 %v1839, %v2222
        %v2224 = vpop.f32.mrb[0].mxu0
        %2225 = vmatprep.mubr.f32.mxu0 %v1515
        %2226 = vmatmul.mubr.f32.gmra.mrb[0].mxu0 %v1514
        %v2227 = vpop.f32.mrb[0].mxu0
        %v2228 = vadd.f32 %v1844, %v2227
        %v2229 = vpop.f32.mrb[0].mxu0
        %2230 = vmatprep.mubr.f32.mxu0 %v1517
        %2231 = vmatmul.mubr.f32.gmra.mrb[0].mxu0 %v1516
        %v2232 = vpop.f32.mrb[0].mxu0
        %v2233 = vadd.f32 %v1849, %v2232
        %v2234 = vpop.f32.mrb[0].mxu0
        %2235 = vmatprep.mubr.f32.mxu0 %v1519
        %2236 = vmatmul.mubr.f32.gmra.mrb[0].mxu0 %v1518
        %v2237 = vpop.f32.mrb[0].mxu0
        %v2238 = vadd.f32 %v1854, %v2237
        %v2239 = vpop.f32.mrb[0].mxu0
        %2240 = vmatprep.mubr.f32.mxu0 %v1521
        %2241 = vmatmul.mubr.f32.gmra.mrb[0].mxu0 %v1520
        %v2242 = vpop.f32.mrb[0].mxu0
        %v2243 = vadd.f32 %v1859, %v2242
        %v2244 = vpop.f32.mrb[0].mxu0
        %2245 = vmatprep.mubr.f32.mxu0 %v1523
        %2246 = vmatmul.mubr.f32.gmra.mrb[0].mxu0 %v1522
        %v2247 = vpop.f32.mrb[0].mxu0
        %v2248 = vadd.f32 %v1864, %v2247
        %v2249 = vpop.f32.mrb[0].mxu0
        %2250 = vmatprep.mubr.f32.mxu0 %v1525
        %2251 = vmatmul.mubr.f32.gmra.mrb[0].mxu0 %v1524
        %v2252 = vpop.f32.mrb[0].mxu0
        %v2253 = vadd.f32 %v1869, %v2252
        %v2254 = vpop.f32.mrb[0].mxu0
        %2255 = vmatprep.mubr.f32.mxu0 %v1527
        %2256 = vmatmul.mubr.f32.gmra.mrb[0].mxu0 %v1526
        %v2257 = vpop.f32.mrb[0].mxu0
        %v2258 = vadd.f32 %v1874, %v2257
        %v2259 = vpop.f32.mrb[0].mxu0
        %2260 = vmatprep.mubr.f32.mxu0 %v1529
        %2261 = vmatmul.mubr.f32.gmra.mrb[0].mxu0 %v1528
        %v2262 = vpop.f32.mrb[0].mxu0
        %v2263 = vadd.f32 %v1879, %v2262
        %v2264 = vpop.f32.mrb[0].mxu0
        %2265 = vmatprep.mubr.f32.mxu0 %v1531
        %2266 = vmatmul.mubr.f32.gmra.mrb[0].mxu0 %v1530
        %v2267 = vpop.f32.mrb[0].mxu0
        %v2268 = vadd.f32 %v1884, %v2267
        %v2269 = vpop.f32.mrb[0].mxu0
        %2270 = vmatprep.mubr.f32.mxu0 %v1533
        %2271 = vmatmul.mubr.f32.gmra.mrb[0].mxu0 %v1532
        %v2272 = vpop.f32.mrb[0].mxu0
        %v2273 = vadd.f32 %v1889, %v2272
        %v2274 = vpop.f32.mrb[0].mxu0
        %2275 = vmatprep.mubr.f32.mxu0 %v1535
        %2276 = vmatmul.mubr.f32.gmra.mrb[0].mxu0 %v1534
        %v2277 = vpop.f32.mrb[0].mxu0
        %v2278 = vadd.f32 %v1894, %v2277
        %v2279 = vpop.f32.mrb[0].mxu0
        %2280 = vmatprep.mubr.f32.mxu0 %v1537
        %2281 = vmatmul.mubr.f32.gmra.mrb[0].mxu0 %v1536
        %v2282 = vpop.f32.mrb[0].mxu0
        %v2283 = vadd.f32 %v1899, %v2282
        %v2284 = vpop.f32.mrb[0].mxu0
        %2285 = vmatprep.mubr.f32.mxu0 %v1539
        %2286 = vmatmul.mubr.f32.gmra.mrb[0].mxu0 %v1538
        %v2287 = vpop.f32.mrb[0].mxu0
        %v2288 = vadd.f32 %v1904, %v2287
        %v2289 = vpop.f32.mrb[0].mxu0
        %2290 = vmatprep.mubr.f32.mxu0 %v1541
        %2291 = vmatmul.mubr.f32.gmra.mrb[0].mxu0 %v1540
        %v2292 = vpop.f32.mrb[0].mxu0
        %v2293 = vadd.f32 %v1909, %v2292
        %v2294 = vpop.f32.mrb[0].mxu0
        %2295 = vmatprep.mubr.f32.mxu0 %v1543
        %2296 = vmatmul.mubr.f32.gmra.mrb[0].mxu0 %v1542
        %v2297 = vpop.f32.mrb[0].mxu0
        %v2298 = vadd.f32 %v1914, %v2297
        %v2299 = vpop.f32.mrb[0].mxu0
        %2300 = vmatprep.mubr.f32.mxu0 %v1545
        %2301 = vmatmul.mubr.f32.gmra.mrb[0].mxu0 %v1544
        %v2302 = vpop.f32.mrb[0].mxu0
        %v2303 = vadd.f32 %v1919, %v2302
        %v2304 = vpop.f32.mrb[0].mxu0
        %2305 = vmatprep.mubr.f32.mxu0 %v1547
        %2306 = vmatmul.mubr.f32.gmra.mrb[0].mxu0 %v1546
        %v2307 = vpop.f32.mrb[0].mxu0
        %v2308 = vadd.f32 %v1924, %v2307
        %v2309 = vpop.f32.mrb[0].mxu0
        %2310 = vmatprep.mubr.f32.mxu0 %v1549
        %2311 = vmatmul.mubr.f32.gmra.mrb[0].mxu0 %v1548
        %v2312 = vpop.f32.mrb[0].mxu0
        %v2313 = vadd.f32 %v1929, %v2312
        %v2314 = vpop.f32.mrb[0].mxu0
        %2315 = vmatprep.mubr.f32.mxu0 %v1551
        %2316 = vmatmul.mubr.f32.gmra.mrb[0].mxu0 %v1550
        %v2317 = vpop.f32.mrb[0].mxu0
        %v2318 = vadd.f32 %v1934, %v2317
        %v2319 = vpop.f32.mrb[0].mxu0
        %2320 = vdwg.mxu0
        %v2321 = vmax.f32 %v2003, 0.0
        %v2322 = vmax.f32 %v2008, 0.0
        %v2323 = vmax.f32 %v2013, 0.0
        %v2324 = vmax.f32 %v2018, 0.0
        %v2325 = vmax.f32 %v2023, 0.0
        %v2326 = vmax.f32 %v2028, 0.0
        %v2327 = vmax.f32 %v2033, 0.0
        %v2328 = vmax.f32 %v2038, 0.0
        %v2329 = vmax.f32 %v2043, 0.0
        %v2330 = vmax.f32 %v2048, 0.0
        %v2331 = vmax.f32 %v2053, 0.0
        %v2332 = vmax.f32 %v2058, 0.0
        %v2333 = vmax.f32 %v2063, 0.0
        %v2334 = vmax.f32 %v2068, 0.0
        %v2335 = vmax.f32 %v2073, 0.0
        %v2336 = vmax.f32 %v2078, 0.0
        %v2337 = vmax.f32 %v2083, 0.0
        %v2338 = vmax.f32 %v2088, 0.0
        %v2339 = vmax.f32 %v2093, 0.0
        %v2340 = vmax.f32 %v2098, 0.0
        %v2341 = vmax.f32 %v2103, 0.0
        %v2342 = vmax.f32 %v2108, 0.0
        %v2343 = vmax.f32 %v2113, 0.0
        %v2344 = vmax.f32 %v2118, 0.0
        %v2345 = vmax.f32 %v2123, 0.0
        %v2346 = vmax.f32 %v2128, 0.0
        %v2347 = vmax.f32 %v2133, 0.0
        %v2348 = vmax.f32 %v2138, 0.0
        %v2349 = vmax.f32 %v2143, 0.0
        %v2350 = vmax.f32 %v2148, 0.0
        %v2351 = vmax.f32 %v2153, 0.0
        %v2352 = vmax.f32 %v2158, 0.0
        %v2353 = vmax.f32 %v2163, 0.0
        %v2354 = vmax.f32 %v2168, 0.0
        %v2355 = vmax.f32 %v2173, 0.0
        %v2356 = vmax.f32 %v2178, 0.0
        %v2357 = vmax.f32 %v2183, 0.0
        %v2358 = vmax.f32 %v2188, 0.0
        %v2359 = vmax.f32 %v2193, 0.0
        %v2360 = vmax.f32 %v2198, 0.0
        %v2361 = vmax.f32 %v2203, 0.0
        %v2362 = vmax.f32 %v2208, 0.0
        %v2363 = vmax.f32 %v2213, 0.0
        %v2364 = vmax.f32 %v2218, 0.0
        %v2365 = vmax.f32 %v2223, 0.0
        %v2366 = vmax.f32 %v2228, 0.0
        %v2367 = vmax.f32 %v2233, 0.0
        %v2368 = vmax.f32 %v2238, 0.0
        %v2369 = vmax.f32 %v2243, 0.0
        %v2370 = vmax.f32 %v2248, 0.0
        %v2371 = vmax.f32 %v2253, 0.0
        %v2372 = vmax.f32 %v2258, 0.0
        %v2373 = vmax.f32 %v2263, 0.0
        %v2374 = vmax.f32 %v2268, 0.0
        %v2375 = vmax.f32 %v2273, 0.0
        %v2376 = vmax.f32 %v2278, 0.0
        %v2377 = vmax.f32 %v2283, 0.0
        %v2378 = vmax.f32 %v2288, 0.0
        %v2379 = vmax.f32 %v2293, 0.0
        %v2380 = vmax.f32 %v2298, 0.0
        %v2381 = vmax.f32 %v2303, 0.0
        %v2382 = vmax.f32 %v2308, 0.0
        %v2383 = vmax.f32 %v2313, 0.0
        %v2384 = vmax.f32 %v2318, 0.0
        %v2385 = vld [vmem:[%s9] sm:$0xff]
        %v2386 = vld [vmem:[%s9 + $0x8] sm:$0xff]
        %v2387 = vld [vmem:[%s10] sm:$0xf]
        %2389 = vset.pattern.permute.xlu0 0
        %2390 = vperm.xlu0 %2389, %v2387
        %v2391 = vpop.permute.xlu0 %2390
        %v2395 = vcombine.high %v2385, %v2385
        %v2396 = vcombine.high %v2386, %v2386
        %2399 = vmatprep.subr.mxu0 0.0
        %2400 = vmatpush1.msra.mxu0 %v2321
        %2401 = vmatprep.subr.mxu0 0.0
        %2402 = vmatpush1.msra.mxu0 %v2322
        %2403 = vmatprep.subr.mxu0 0.0
        %2404 = vmatpush1.msra.mxu0 %v2323
        %2405 = vmatprep.subr.mxu0 0.0
        %2406 = vmatpush1.msra.mxu0 %v2324
        %2407 = vmatprep.subr.mxu0 0.0
        %2408 = vmatpush1.msra.mxu0 %v2325
        %2409 = vmatprep.subr.mxu0 0.0
        %2410 = vmatpush1.msra.mxu0 %v2326
        %2411 = vmatprep.subr.mxu0 0.0
        %2412 = vmatpush1.msra.mxu0 %v2327
        %2413 = vmatprep.subr.mxu0 0.0
        %2414 = vmatpush1.msra.mxu0 %v2328
        %2415 = vmatprep.subr.mxu0 0.0
        %2416 = vmatpush1.msra.mxu0 %v2329
        %2417 = vmatprep.subr.mxu0 0.0
        %2418 = vmatpush1.msra.mxu0 %v2330
        %2419 = vmatprep.subr.mxu0 0.0
        %2420 = vmatpush1.msra.mxu0 %v2331
        %2421 = vmatprep.subr.mxu0 0.0
        %2422 = vmatpush1.msra.mxu0 %v2332
        %2423 = vmatprep.subr.mxu0 0.0
        %2424 = vmatpush1.msra.mxu0 %v2333
        %2425 = vmatprep.subr.mxu0 0.0
        %2426 = vmatpush1.msra.mxu0 %v2334
        %2427 = vmatprep.subr.mxu0 0.0
        %2428 = vmatpush1.msra.mxu0 %v2335
        %2429 = vmatprep.subr.mxu0 0.0
        %2430 = vmatpush1.msra.mxu0 %v2336
        %2431 = vmatprep.subr.mxu0 0.0
        %2432 = vmatpush1.msra.mxu0 %v2337
        %2433 = vmatprep.subr.mxu0 0.0
        %2434 = vmatpush1.msra.mxu0 %v2338
        %2435 = vmatprep.subr.mxu0 0.0
        %2436 = vmatpush1.msra.mxu0 %v2339
        %2437 = vmatprep.subr.mxu0 0.0
        %2438 = vmatpush1.msra.mxu0 %v2340
        %2439 = vmatprep.subr.mxu0 0.0
        %2440 = vmatpush1.msra.mxu0 %v2341
        %2441 = vmatprep.subr.mxu0 0.0
        %2442 = vmatpush1.msra.mxu0 %v2342
        %2443 = vmatprep.subr.mxu0 0.0
        %2444 = vmatpush1.msra.mxu0 %v2343
        %2445 = vmatprep.subr.mxu0 0.0
        %2446 = vmatpush1.msra.mxu0 %v2344
        %2447 = vmatprep.subr.mxu0 0.0
        %2448 = vmatpush1.msra.mxu0 %v2345
        %2449 = vmatprep.subr.mxu0 0.0
        %2450 = vmatpush1.msra.mxu0 %v2346
        %2451 = vmatprep.subr.mxu0 0.0
        %2452 = vmatpush1.msra.mxu0 %v2347
        %2453 = vmatprep.subr.mxu0 0.0
        %2454 = vmatpush1.msra.mxu0 %v2348
        %2455 = vmatprep.subr.mxu0 0.0
        %2456 = vmatpush1.msra.mxu0 %v2349
        %2457 = vmatprep.subr.mxu0 0.0
        %2458 = vmatpush1.msra.mxu0 %v2350
        %2459 = vmatprep.subr.mxu0 0.0
        %2460 = vmatpush1.msra.mxu0 %v2351
        %2461 = vmatprep.subr.mxu0 0.0
        %2462 = vmatpush1.msra.mxu0 %v2352
        %2463 = vmatprep.mubr.f32.mxu0 %v2395
        %2464 = vmatmul.mubr.f32.gmra.mrb[0].mxu0 %v2385
        %v2465 = vpop.f32.mrb[0].mxu0
        %v2466 = vadd.f32 %v2391, %v2465
        %v2467 = vpop.f32.mrb[0].mxu0
        %2468 = vdwg.mxu0
        %2469 = vmatprep.subr.mxu0 0.0
        %2470 = vmatpush1.msra.mxu0 %v2353
        %2471 = vmatprep.subr.mxu0 0.0
        %2472 = vmatpush1.msra.mxu0 %v2354
        %2473 = vmatprep.subr.mxu0 0.0
        %2474 = vmatpush1.msra.mxu0 %v2355
        %2475 = vmatprep.subr.mxu0 0.0
        %2476 = vmatpush1.msra.mxu0 %v2356
        %2477 = vmatprep.subr.mxu0 0.0
        %2478 = vmatpush1.msra.mxu0 %v2357
        %2479 = vmatprep.subr.mxu0 0.0
        %2480 = vmatpush1.msra.mxu0 %v2358
        %2481 = vmatprep.subr.mxu0 0.0
        %2482 = vmatpush1.msra.mxu0 %v2359
        %2483 = vmatprep.subr.mxu0 0.0
        %2484 = vmatpush1.msra.mxu0 %v2360
        %2485 = vmatprep.subr.mxu0 0.0
        %2486 = vmatpush1.msra.mxu0 %v2361
        %2487 = vmatprep.subr.mxu0 0.0
        %2488 = vmatpush1.msra.mxu0 %v2362
        %2489 = vmatprep.subr.mxu0 0.0
        %2490 = vmatpush1.msra.mxu0 %v2363
        %2491 = vmatprep.subr.mxu0 0.0
        %2492 = vmatpush1.msra.mxu0 %v2364
        %2493 = vmatprep.subr.mxu0 0.0
        %2494 = vmatpush1.msra.mxu0 %v2365
        %2495 = vmatprep.subr.mxu0 0.0
        %2496 = vmatpush1.msra.mxu0 %v2366
        %2497 = vmatprep.subr.mxu0 0.0
        %2498 = vmatpush1.msra.mxu0 %v2367
        %2499 = vmatprep.subr.mxu0 0.0
        %2500 = vmatpush1.msra.mxu0 %v2368
        %2501 = vmatprep.subr.mxu0 0.0
        %2502 = vmatpush1.msra.mxu0 %v2369
        %2503 = vmatprep.subr.mxu0 0.0
        %2504 = vmatpush1.msra.mxu0 %v2370
        %2505 = vmatprep.subr.mxu0 0.0
        %2506 = vmatpush1.msra.mxu0 %v2371
        %2507 = vmatprep.subr.mxu0 0.0
        %2508 = vmatpush1.msra.mxu0 %v2372
        %2509 = vmatprep.subr.mxu0 0.0
        %2510 = vmatpush1.msra.mxu0 %v2373
        %2511 = vmatprep.subr.mxu0 0.0
        %2512 = vmatpush1.msra.mxu0 %v2374
        %2513 = vmatprep.subr.mxu0 0.0
        %2514 = vmatpush1.msra.mxu0 %v2375
        %2515 = vmatprep.subr.mxu0 0.0
        %2516 = vmatpush1.msra.mxu0 %v2376
        %2517 = vmatprep.subr.mxu0 0.0
        %2518 = vmatpush1.msra.mxu0 %v2377
        %2519 = vmatprep.subr.mxu0 0.0
        %2520 = vmatpush1.msra.mxu0 %v2378
        %2521 = vmatprep.subr.mxu0 0.0
        %2522 = vmatpush1.msra.mxu0 %v2379
        %2523 = vmatprep.subr.mxu0 0.0
        %2524 = vmatpush1.msra.mxu0 %v2380
        %2525 = vmatprep.subr.mxu0 0.0
        %2526 = vmatpush1.msra.mxu0 %v2381
        %2527 = vmatprep.subr.mxu0 0.0
        %2528 = vmatpush1.msra.mxu0 %v2382
        %2529 = vmatprep.subr.mxu0 0.0
        %2530 = vmatpush1.msra.mxu0 %v2383
        %2531 = vmatprep.subr.mxu0 0.0
        %2532 = vmatpush1.msra.mxu0 %v2384
        %2533 = vmatprep.mubr.f32.mxu0 %v2396
        %2534 = vmatmul.mubr.f32.gmra.mrb[0].mxu0 %v2386
        %v2535 = vpop.f32.mrb[0].mxu0
        %v2536 = vadd.f32 %v2466, %v2535
        %v2537 = vpop.f32.mrb[0].mxu0
        %2538 = vdwg.mxu0
        %2539 = vst [vmem:[%s414] sm:$0xf] %v2536
        %s2540 = sand.u32 %s286, 1
        %s2541 = scalar_lea.sflag [#allocation4], %s2540
        %s2542 = sand.u32 %s286, 1
        %s2543 = smul.addr %s2542, 4
        %s2544 = scalar_lea.vmem [#allocation5], %s2543
        // Predicated region
        $region69: #{tpu_custom_call.1} parent=63 // pred_check
          %p2545 = pneg %p296
        $region70: #{tpu_custom_call.1} parent=63 // pred_check_branch
          %2547 = sbr.rel (%p2545) target = $region72
        $region71: #{tpu_custom_call.1} parent=63 // pred_region
          %s2549 = ssub.s32 64, 64
          %2550 = vsyncadd %s2541, %s2549
          %s2551 = sadd.s32 %s31, %s30
          %s2552 = smul.addr %s2551, 64
          %s2553 = scalar_lea.hbm %s11, %s2552
          %s2555 = sshll.u32 %s2544, 4
          %s2556 = int_to_ptr.vmem [resolvable:$true] %s2555
          %2558 = dma.vmem_to_hbm [thread:$0]  %s2556, 64, %s2553, %s2541
        $region72: #{tpu_custom_call.1} parent=63 // pred_fallthru
          _
      $region64: #{tpu_custom_call.1} parent=5 // pred_fallthru
        _
      %p2559 = scmp.le.s32.totalorder 2, %s21
      // Predicated region
      $region73: #{tpu_custom_call.1} parent=5 // pred_check
        %p2560 = pneg %p2559
      $region74: #{tpu_custom_call.1} parent=5 // pred_check_branch
        %2562 = sbr.rel (%p2560) target = $region76
      $region75: #{tpu_custom_call.1} parent=5 // pred_region
        %s2563 = ssub.s32 %s21, 2
        // Predicated region
        $region77: #{tpu_custom_call.1} parent=75 // pred_check
          %p2564 = pneg %p302
        $region78: #{tpu_custom_call.1} parent=75 // pred_check_branch
          %2566 = sbr.rel (%p2564) target = $region80
        $region79: #{tpu_custom_call.1} parent=75 // pred_region
          %s2567 = sand.u32 %s287, 1
          %s2568 = scalar_lea.sflag [#allocation4], %s2567
          %s2569 = sand.u32 %s287, 1
          %s2570 = smul.addr %s2569, 4
          %s2571 = scalar_lea.vmem [#allocation5], %s2570
          %2572 = dma.done %s2568, 64
        $region80: #{tpu_custom_call.1} parent=75 // pred_fallthru
          _
      $region76: #{tpu_custom_call.1} parent=5 // pred_fallthru
        _
    $region6: #{tpu_custom_call.1} parent=1 // loop_footer
      %s25 = sadd.s32 1, %s21
    $region7: #{tpu_custom_call.1} parent=1 // loop_footer_branch
      %20 = sbr.rel target = $region3
    $region8: #{tpu_custom_call.1} parent=1 // loop_exit
      _
    %2573 = vsyncpa [#allocation3], 1
    %s2574 = scalar_lea.sflag [#allocation3], 1
    %2575 = vsyncpa %s2574, 1
    %2576 = vsyncpa [#allocation4], 1
    %s2577 = scalar_lea.sflag [#allocation4], 1
    %2578 = vsyncpa %s2577, 1

</llo_original>
